<compile_context>
chip_gen: v7x
topology: tpu7x:2x2x1
jax: 0.10.0
libtpu: 0.0.40
codegen_flags: <defaults>
</compile_context>

<pallas_src>
import jax
import jax.numpy as jnp
from jax.experimental import pallas as pl
from jax.experimental.pallas import tpu as pltpu

D_IN = 256        # fixed latent size from the module
D_MODEL = 32      # opt.d_model (small, synthetic)
D_HID = 1024      # hidden width from the module
D_OUT_PAD = 128   # lane-dense padded output width (multiple of 128 lanes)
BN_EPS = 1e-5
LRELU_SLOPE = 0.2


def _leaky_relu(x):
    return jnp.where(x > 0, x, LRELU_SLOPE * x)


def decoder_kernel(z_ref, w1_ref, b1_ref, w2_ref, b2_ref,
                   gamma_ref, beta_ref, w3_ref, b3_ref, o_ref):
    # ---- Layer 1: Linear(256 -> d_model) + LeakyReLU(0.2) ------------------
    # z arrives bf16; bf16 MXU operands, f32 accumulate, f32 element-wise.
    h1 = jnp.dot(z_ref[...], w1_ref[...],
                 preferred_element_type=jnp.float32) + b1_ref[...]
    h1 = _leaky_relu(h1)                                           # (B, 32) f32

    # ---- Layer 2: Linear(d_model -> 1024) -----------------------------------
    h2 = jnp.dot(h1.astype(jnp.bfloat16), w2_ref[...],
                 preferred_element_type=jnp.float32) + b2_ref[...]  # (B, 1024) f32

    # ---- BatchNorm1d(1024), training mode, folded into one fused affine -----
    # One pass for sum and sum-of-squares; biased (training-mode) variance.
    n = h2.shape[0]
    inv_n = jnp.float32(1.0 / n)
    s1 = jnp.sum(h2, axis=0, keepdims=True)                        # (1, 1024)
    s2 = jnp.sum(h2 * h2, axis=0, keepdims=True)                   # (1, 1024)
    mean = s1 * inv_n
    var = jnp.maximum(s2 * inv_n - mean * mean, 0.0)               # guard fp round-off
    inv = jax.lax.rsqrt(var + BN_EPS) * gamma_ref[...]             # EUP rsqrt
    shift = beta_ref[...] - mean * inv
    h2n = _leaky_relu(h2 * inv + shift)                            # (B, 1024) f32

    # ---- Layer 3: Linear(1024 -> 128-padded) + Tanh -------------------------
    # Columns >= D_MODEL use zero-padded W3/b3 (tanh(0) = 0); the pad keeps the
    # output store lane-dense (unmasked 128-lane vst) at no extra MXU cost.
    h3 = jnp.dot(h2n.astype(jnp.bfloat16), w3_ref[...],
                 preferred_element_type=jnp.float32) + b3_ref[...]
    o_ref[...] = jnp.tanh(h3)                                      # (B, 128)


def decoder_forward(z, prepared_params):
    """z: (B, 256) -> img: (B, 1, d_model) float32.

    `prepared_params` must come from `prepare_params` (bf16 weights, padded W3).
    Prefer feeding z already in bf16 from its producer; f32 is cast here.
    Use B a multiple of 16 for dense bf16 sublane packing.
    """
    B = z.shape[0]
    if z.dtype != jnp.bfloat16:
        # TODO(synk): ideally the producer (Encoder) emits bf16 z directly so
        # the HBM->VMEM DMA of the largest activation input is halved upstream.
        z = z.astype(jnp.bfloat16)

    (w1, b1, w2, b2, gamma, beta, w3p, b3p) = prepared_params
    operands = (z, w1, b1, w2, b2, gamma, beta, w3p, b3p)

    flops = 2 * B * (D_IN * D_MODEL + D_MODEL * D_HID + D_HID * D_OUT_PAD)
    transcendentals = B * D_OUT_PAD + D_HID            # tanh + rsqrt
    bytes_accessed = sum(int(x.size) * x.dtype.itemsize for x in operands) \
        + B * D_OUT_PAD * 4

    out_pad = pl.pallas_call(
        decoder_kernel,
        out_shape=jax.ShapeDtypeStruct((B, D_OUT_PAD), jnp.float32),
        # No grid: the full working set lives wholly in VMEM, so every operand
        # gets a full-extent block.
        in_specs=[pl.BlockSpec(memory_space=pltpu.MemorySpace.VMEM)] * 9,
        out_specs=pl.BlockSpec(memory_space=pltpu.MemorySpace.VMEM),
        cost_estimate=pl.CostEstimate(
            flops=flops,
            transcendentals=transcendentals,
            bytes_accessed=bytes_accessed,
        ),
    )(*operands)

    # Un-pad the 128 lane-dense columns and apply the module's .view().
    return out_pad[:, :D_MODEL].reshape(B, 1, D_MODEL)


def prepare_params(params):
    """One-time conversion: weights -> bf16 for the MXU; W3/b3 zero-padded to
    128 output columns for lane-dense stores; biases / BN params stay f32."""
    (w1, b1, w2, b2, gamma, beta, w3, b3) = params
    pad = D_OUT_PAD - D_MODEL
    w3p = jnp.pad(w3, ((0, 0), (0, pad))).astype(jnp.bfloat16)   # (1024, 128)
    b3p = jnp.pad(b3, ((0, 0), (0, pad)))                        # (1, 128) f32
    return (w1.astype(jnp.bfloat16), b1,
            w2.astype(jnp.bfloat16), b2,
            gamma, beta,
            w3p, b3p)


def init_params(key):
    """Deterministic PyTorch-Linear-style init (uniform +/- 1/sqrt(fan_in))."""
    ks = jax.random.split(key, 6)

    def lin(kw, kb, fan_in, fan_out):
        bound = 1.0 / jnp.sqrt(jnp.float32(fan_in))
        w = jax.random.uniform(kw, (fan_in, fan_out), jnp.float32, -bound, bound)
        b = jax.random.uniform(kb, (1, fan_out), jnp.float32, -bound, bound)
        return w, b

    w1, b1 = lin(ks[0], ks[1], D_IN, D_MODEL)
    w2, b2 = lin(ks[2], ks[3], D_MODEL, D_HID)
    w3, b3 = lin(ks[4], ks[5], D_HID, D_MODEL)
    gamma = jnp.ones((1, D_HID), jnp.float32)   # BatchNorm1d affine weight
    beta = jnp.zeros((1, D_HID), jnp.float32)   # BatchNorm1d affine bias
    return (w1, b1, w2, b2, gamma, beta, w3, b3)


def decoder_reference(z, params):
    """Pure-JAX f32 reference of the PyTorch training-mode forward."""
    (w1, b1, w2, b2, gamma, beta, w3, b3) = params
    h1 = _leaky_relu(z @ w1 + b1)
    h2 = h1 @ w2 + b2
    mean = jnp.mean(h2, axis=0, keepdims=True)
    var = jnp.mean((h2 - mean) ** 2, axis=0, keepdims=True)   # biased variance
    h2n = _leaky_relu((h2 - mean) * jax.lax.rsqrt(var + BN_EPS) * gamma + beta)
    y = jnp.tanh(h2n @ w3 + b3)
    return y.reshape(z.shape[0], 1, D_MODEL)


if __name__ == "__main__":
    key = jax.random.PRNGKey(0)
    k_params, k_z = jax.random.split(key)

    raw_params = init_params(k_params)
    params = prepare_params(raw_params)

    # B a multiple of 16: bf16 vregs pack 16 sublanes, so the (B, .) LHS tiles
    # stay fully packed.  Scaling B (hundreds-to-thousands) per call is the
    # main wall-clock lever — this call is per-call-overhead bound at small B.
    B = 16
    z = jax.random.normal(k_z, (B, D_IN), dtype=jnp.float32)

    img = decoder_forward(z, params)
    img = jax.block_until_ready(img)

    assert img.shape == (B, 1, D_MODEL), img.shape
    assert img.dtype == jnp.float32
    assert bool(jnp.all(jnp.isfinite(img)))

    # Tolerance check vs. the f32 reference (bf16 MXU operands are a stated
    # perf tradeoff; tanh output is bounded so abs tolerance is meaningful).
    ref = jax.block_until_ready(decoder_reference(z, raw_params))
    max_err = float(jnp.max(jnp.abs(img - ref)))
    assert max_err < 1e-1, f"max abs error vs f32 reference too large: {max_err}"

    print("KERNEL_OK")
</pallas_src>

<mosaic_0001>
module attributes {stable_mosaic.version = 11 : i64} {
  func.func @decoder_kernel(%arg0: memref<16x256xbf16, #tpu.memory_space<vmem>>, %arg1: memref<256x32xbf16, #tpu.memory_space<vmem>>, %arg2: memref<1x32xf32, #tpu.memory_space<vmem>>, %arg3: memref<32x1024xbf16, #tpu.memory_space<vmem>>, %arg4: memref<1x1024xf32, #tpu.memory_space<vmem>>, %arg5: memref<1x1024xf32, #tpu.memory_space<vmem>>, %arg6: memref<1x1024xf32, #tpu.memory_space<vmem>>, %arg7: memref<1024x128xbf16, #tpu.memory_space<vmem>>, %arg8: memref<1x128xf32, #tpu.memory_space<vmem>>, %arg9: memref<16x128xf32, #tpu.memory_space<vmem>>) attributes {dimension_semantics = [], scalar_prefetch = 0 : i64, scratch_operands = 0 : i64, tpu.core_type = #tpu.core_type<tc>} {
    %c0 = arith.constant 0 : index
    %c0_0 = arith.constant 0 : index
    %0 = vector.load %arg0[%c0, %c0_0] : memref<16x256xbf16, #tpu.memory_space<vmem>>, vector<16x256xbf16>
    %c0_1 = arith.constant 0 : index
    %c0_2 = arith.constant 0 : index
    %1 = vector.load %arg1[%c0_1, %c0_2] : memref<256x32xbf16, #tpu.memory_space<vmem>>, vector<256x32xbf16>
    %cst = arith.constant dense<0.000000e+00> : vector<16x32xf32>
    %2 = tpu.matmul %0, %1, %cst {dimension_numbers = #tpu.dot_dimension_numbers<[1], [0], [0], [1], [0, 0, 1, 1], [], []>} : vector<16x256xbf16>, vector<256x32xbf16>, vector<16x32xf32> -> vector<16x32xf32>
    %c0_3 = arith.constant 0 : index
    %c0_4 = arith.constant 0 : index
    %3 = vector.load %arg2[%c0_3, %c0_4] : memref<1x32xf32, #tpu.memory_space<vmem>>, vector<1x32xf32>
    %4 = vector.broadcast %3 : vector<1x32xf32> to vector<16x32xf32>
    %5 = arith.addf %2, %4 : vector<16x32xf32>
    %cst_5 = arith.constant 0.000000e+00 : f32
    %6 = vector.broadcast %cst_5 : f32 to vector<16x32xf32>
    %7 = arith.cmpf ogt, %5, %6 : vector<16x32xf32>
    %cst_6 = arith.constant 2.000000e-01 : f32
    %8 = vector.broadcast %cst_6 : f32 to vector<16x32xf32>
    %9 = arith.mulf %8, %5 : vector<16x32xf32>
    %10 = arith.select %7, %5, %9 : vector<16x32xi1>, vector<16x32xf32>
    %11 = arith.truncf %10 : vector<16x32xf32> to vector<16x32xbf16>
    %c0_7 = arith.constant 0 : index
    %c0_8 = arith.constant 0 : index
    %12 = vector.load %arg3[%c0_7, %c0_8] : memref<32x1024xbf16, #tpu.memory_space<vmem>>, vector<32x1024xbf16>
    %cst_9 = arith.constant dense<0.000000e+00> : vector<16x1024xf32>
    %13 = tpu.matmul %11, %12, %cst_9 {dimension_numbers = #tpu.dot_dimension_numbers<[1], [0], [0], [1], [0, 0, 1, 1], [], []>} : vector<16x32xbf16>, vector<32x1024xbf16>, vector<16x1024xf32> -> vector<16x1024xf32>
    %c0_10 = arith.constant 0 : index
    %c0_11 = arith.constant 0 : index
    %14 = vector.load %arg4[%c0_10, %c0_11] : memref<1x1024xf32, #tpu.memory_space<vmem>>, vector<1x1024xf32>
    %15 = vector.broadcast %14 : vector<1x1024xf32> to vector<16x1024xf32>
    %16 = arith.addf %13, %15 : vector<16x1024xf32>
    %cst_12 = arith.constant dense<0.000000e+00> : vector<1024xf32>
    %17 = vector.multi_reduction <add>, %16, %cst_12 [0] : vector<16x1024xf32> to vector<1024xf32>
    %18 = vector.shape_cast %17 : vector<1024xf32> to vector<1x1024xf32>
    %19 = arith.mulf %16, %16 : vector<16x1024xf32>
    %cst_13 = arith.constant dense<0.000000e+00> : vector<1024xf32>
    %20 = vector.multi_reduction <add>, %19, %cst_13 [0] : vector<16x1024xf32> to vector<1024xf32>
    %21 = vector.shape_cast %20 : vector<1024xf32> to vector<1x1024xf32>
    %cst_14 = arith.constant 6.250000e-02 : f32
    %22 = vector.broadcast %cst_14 : f32 to vector<1x1024xf32>
    %23 = arith.mulf %18, %22 : vector<1x1024xf32>
    %cst_15 = arith.constant 6.250000e-02 : f32
    %24 = vector.broadcast %cst_15 : f32 to vector<1x1024xf32>
    %25 = arith.mulf %21, %24 : vector<1x1024xf32>
    %26 = arith.mulf %23, %23 : vector<1x1024xf32>
    %27 = arith.subf %25, %26 : vector<1x1024xf32>
    %cst_16 = arith.constant 0.000000e+00 : f32
    %28 = vector.broadcast %cst_16 : f32 to vector<1x1024xf32>
    %29 = arith.maximumf %27, %28 : vector<1x1024xf32>
    %cst_17 = arith.constant 9.99999974E-6 : f32
    %30 = vector.broadcast %cst_17 : f32 to vector<1x1024xf32>
    %31 = arith.addf %29, %30 : vector<1x1024xf32>
    %32 = math.rsqrt %31 : vector<1x1024xf32>
    %c0_18 = arith.constant 0 : index
    %c0_19 = arith.constant 0 : index
    %33 = vector.load %arg5[%c0_18, %c0_19] : memref<1x1024xf32, #tpu.memory_space<vmem>>, vector<1x1024xf32>
    %34 = arith.mulf %32, %33 : vector<1x1024xf32>
    %c0_20 = arith.constant 0 : index
    %c0_21 = arith.constant 0 : index
    %35 = vector.load %arg6[%c0_20, %c0_21] : memref<1x1024xf32, #tpu.memory_space<vmem>>, vector<1x1024xf32>
    %36 = arith.mulf %23, %34 : vector<1x1024xf32>
    %37 = arith.subf %35, %36 : vector<1x1024xf32>
    %38 = vector.broadcast %34 : vector<1x1024xf32> to vector<16x1024xf32>
    %39 = arith.mulf %16, %38 : vector<16x1024xf32>
    %40 = vector.broadcast %37 : vector<1x1024xf32> to vector<16x1024xf32>
    %41 = arith.addf %39, %40 : vector<16x1024xf32>
    %cst_22 = arith.constant 0.000000e+00 : f32
    %42 = vector.broadcast %cst_22 : f32 to vector<16x1024xf32>
    %43 = arith.cmpf ogt, %41, %42 : vector<16x1024xf32>
    %cst_23 = arith.constant 2.000000e-01 : f32
    %44 = vector.broadcast %cst_23 : f32 to vector<16x1024xf32>
    %45 = arith.mulf %44, %41 : vector<16x1024xf32>
    %46 = arith.select %43, %41, %45 : vector<16x1024xi1>, vector<16x1024xf32>
    %47 = arith.truncf %46 : vector<16x1024xf32> to vector<16x1024xbf16>
    %c0_24 = arith.constant 0 : index
    %c0_25 = arith.constant 0 : index
    %48 = vector.load %arg7[%c0_24, %c0_25] : memref<1024x128xbf16, #tpu.memory_space<vmem>>, vector<1024x128xbf16>
    %cst_26 = arith.constant dense<0.000000e+00> : vector<16x128xf32>
    %49 = tpu.matmul %47, %48, %cst_26 {dimension_numbers = #tpu.dot_dimension_numbers<[1], [0], [0], [1], [0, 0, 1, 1], [], []>} : vector<16x1024xbf16>, vector<1024x128xbf16>, vector<16x128xf32> -> vector<16x128xf32>
    %c0_27 = arith.constant 0 : index
    %c0_28 = arith.constant 0 : index
    %50 = vector.load %arg8[%c0_27, %c0_28] : memref<1x128xf32, #tpu.memory_space<vmem>>, vector<1x128xf32>
    %51 = vector.broadcast %50 : vector<1x128xf32> to vector<16x128xf32>
    %52 = arith.addf %49, %51 : vector<16x128xf32>
    %53 = math.tanh %52 : vector<16x128xf32>
    %c0_29 = arith.constant 0 : index
    %c0_30 = arith.constant 0 : index
    %54 = vector.load %arg9[%c0_29, %c0_30] : memref<16x128xf32, #tpu.memory_space<vmem>>, vector<16x128xf32>
    tpu.vector_store %arg9[%c0_29, %c0_30], %53 {strides = array<i32>} : memref<16x128xf32, #tpu.memory_space<vmem>>, vector<16x128xf32>,
    return
  }
}

</mosaic_0001>

<llo_original>
// kernel: tpu_custom_call.1
$region0: #{tpu_custom_call.1}
  #allocation0 [shape = 'u32[]', space=smem, size = 0x4, offset = 0x4, fixed_abs, tag = 'smem constant byte address 0x4 - core index']
  #allocation1 [shape = 'u32[144,128]{1,0:T(1,128)}', space=vmem, size = 0x12000, scoped, tag = 'internal scratch']
  %s0 = inlined_call_operand.vmem [shape: bf16[16,256], index: 0, kind: input, shape index: {}]
  %s1 = inlined_call_operand.vmem [shape: bf16[256,32], index: 1, kind: input, shape index: {}]
  %s2 = inlined_call_operand.vmem [shape: f32[1,32], index: 2, kind: input, shape index: {}]
  %s3 = inlined_call_operand.vmem [shape: bf16[32,1024], index: 3, kind: input, shape index: {}]
  %s4 = inlined_call_operand.vmem [shape: f32[1,1024], index: 4, kind: input, shape index: {}]
  %s5 = inlined_call_operand.vmem [shape: f32[1,1024], index: 5, kind: input, shape index: {}]
  %s6 = inlined_call_operand.vmem [shape: f32[1,1024], index: 6, kind: input, shape index: {}]
  %s7 = inlined_call_operand.hbm [shape: bf16[1024,128], index: 7, kind: input, shape index: {}]
  %s8 = inlined_call_operand.vmem [shape: f32[1,128], index: 8, kind: input, shape index: {}]
  %s9 = inlined_call_operand.hbm [shape: f32[16,128], index: 9, kind: output, shape index: {}]
  %s10 = sld [smem:[#allocation0]]
  $region50: #{tpu_custom_call.1} parent=0
    _
  %s12 = ssub.s32 1, %s10
  %s13 = scalar_select 0, %s12, %s10
  $region1: #{tpu_custom_call.1} parent=0
    #allocation2 [shape = 'u8[262144]{0}', space=vmem, size = 0x40000, scoped, tag = 'input window, operand 7, single buffered']
    #allocation3 [shape = 's32[1]{0}', space=sflag, size = 0x4, scoped, tag = 'scoped memory for tpu_custom_call.1']
    #allocation4 [shape = 's32[1]{0}', space=sflag, size = 0x4, scoped, tag = 'scoped memory for tpu_custom_call.1']
    #allocation5 [shape = 'u8[8192]{0}', space=vmem, size = 0x2000, scoped, tag = 'output window, operand 0, single buffered']
    %14 = vsyncpa [#allocation3], 0
    %15 = vsyncpa [#allocation4], 0
    // Predicated region
    $region2: #{tpu_custom_call.1} parent=1 // pred_check
      _
    $region3: #{tpu_custom_call.1} parent=1 // pred_check_branch
      %17 = sbr.rel (0) target = $region5
    $region4: #{tpu_custom_call.1} parent=1 // pred_region
      _
    $region5: #{tpu_custom_call.1} parent=1 // pred_fallthru
      _
    // Predicated region
    $region6: #{tpu_custom_call.1} parent=1 // pred_check
      _
    $region7: #{tpu_custom_call.1} parent=1 // pred_check_branch
      %19 = sbr.rel (0) target = $region9
    $region8: #{tpu_custom_call.1} parent=1 // pred_region
      _
    $region9: #{tpu_custom_call.1} parent=1 // pred_fallthru
      _
    // Predicated region
    $region10: #{tpu_custom_call.1} parent=1 // pred_check
      _
    $region11: #{tpu_custom_call.1} parent=1 // pred_check_branch
      %21 = sbr.rel (0) target = $region13
    $region12: #{tpu_custom_call.1} parent=1 // pred_region
      _
    $region13: #{tpu_custom_call.1} parent=1 // pred_fallthru
      _
    // Predicated region
    $region14: #{tpu_custom_call.1} parent=1 // pred_check
      _
    $region15: #{tpu_custom_call.1} parent=1 // pred_check_branch
      %23 = sbr.rel (0) target = $region17
    $region16: #{tpu_custom_call.1} parent=1 // pred_region
      _
    $region17: #{tpu_custom_call.1} parent=1 // pred_fallthru
      _
    // Predicated region
    $region18: #{tpu_custom_call.1} parent=1 // pred_check
      _
    $region19: #{tpu_custom_call.1} parent=1 // pred_check_branch
      %25 = sbr.rel (0) target = $region21
    $region20: #{tpu_custom_call.1} parent=1 // pred_region
      _
    $region21: #{tpu_custom_call.1} parent=1 // pred_fallthru
      _
    // Predicated region
    $region22: #{tpu_custom_call.1} parent=1 // pred_check
      _
    $region23: #{tpu_custom_call.1} parent=1 // pred_check_branch
      %27 = sbr.rel (0) target = $region25
    $region24: #{tpu_custom_call.1} parent=1 // pred_region
      _
    $region25: #{tpu_custom_call.1} parent=1 // pred_fallthru
      _
    // Predicated region
    $region26: #{tpu_custom_call.1} parent=1 // pred_check
      _
    $region27: #{tpu_custom_call.1} parent=1 // pred_check_branch
      %29 = sbr.rel (0) target = $region29
    $region28: #{tpu_custom_call.1} parent=1 // pred_region
      _
    $region29: #{tpu_custom_call.1} parent=1 // pred_fallthru
      _
    // Predicated region
    $region30: #{tpu_custom_call.1} parent=1 // pred_check
      _
    $region31: #{tpu_custom_call.1} parent=1 // pred_check_branch
      %31 = sbr.rel (0) target = $region33
    $region32: #{tpu_custom_call.1} parent=1 // pred_region
      %s33 = ssub.s32 8192, 8192
      %34 = vsyncadd [#allocation3], %s33
      %s35 = sshll.u32 [#allocation2], 4
      %s36 = int_to_ptr.vmem [resolvable:$true] %s35
      %41 = dma.hbm_to_vmem [thread:$0]  %s7, 8192, %s36, [#allocation3], 64, 64, 4
    $region33: #{tpu_custom_call.1} parent=1 // pred_fallthru
      _
    // Predicated region
    $region34: #{tpu_custom_call.1} parent=1 // pred_check
      _
    $region35: #{tpu_custom_call.1} parent=1 // pred_check_branch
      %43 = sbr.rel (0) target = $region37
    $region36: #{tpu_custom_call.1} parent=1 // pred_region
      _
    $region37: #{tpu_custom_call.1} parent=1 // pred_fallthru
      _
    // Predicated region
    $region38: #{tpu_custom_call.1} parent=1 // pred_check
      _
    $region39: #{tpu_custom_call.1} parent=1 // pred_check_branch
      %45 = sbr.rel (0) target = $region41
    $region40: #{tpu_custom_call.1} parent=1 // pred_region
      %46 = dma.done [#allocation3], 8192
    $region41: #{tpu_custom_call.1} parent=1 // pred_fallthru
      _
    %v48 = vld [vmem:[%s0] sm:$0xff]
    %v49 = vld [vmem:[%s0 + $0x8] sm:$0xff]
    %v50 = vld [vmem:[%s1] sm:$0xf]
    %v51 = vld [vmem:[%s1 + $0x4] sm:$0xf]
    %v52 = vld [vmem:[%s1 + $0x8] sm:$0xf]
    %v53 = vld [vmem:[%s1 + $0xc] sm:$0xf]
    %v54 = vld [vmem:[%s1 + $0x10] sm:$0xf]
    %v55 = vld [vmem:[%s1 + $0x14] sm:$0xf]
    %v56 = vld [vmem:[%s1 + $0x18] sm:$0xf]
    %v57 = vld [vmem:[%s1 + $0x1c] sm:$0xf]
    %v58 = vld [vmem:[%s1 + $0x20] sm:$0xf]
    %v59 = vld [vmem:[%s1 + $0x24] sm:$0xf]
    %v60 = vld [vmem:[%s1 + $0x28] sm:$0xf]
    %v61 = vld [vmem:[%s1 + $0x2c] sm:$0xf]
    %v62 = vld [vmem:[%s1 + $0x30] sm:$0xf]
    %v63 = vld [vmem:[%s1 + $0x34] sm:$0xf]
    %v64 = vld [vmem:[%s1 + $0x38] sm:$0xf]
    %v65 = vld [vmem:[%s1 + $0x3c] sm:$0xf]
    %v66 = vld [vmem:[%s1 + $0x40] sm:$0xf]
    %v67 = vld [vmem:[%s1 + $0x44] sm:$0xf]
    %v68 = vld [vmem:[%s1 + $0x48] sm:$0xf]
    %v69 = vld [vmem:[%s1 + $0x4c] sm:$0xf]
    %v70 = vld [vmem:[%s1 + $0x50] sm:$0xf]
    %v71 = vld [vmem:[%s1 + $0x54] sm:$0xf]
    %v72 = vld [vmem:[%s1 + $0x58] sm:$0xf]
    %v73 = vld [vmem:[%s1 + $0x5c] sm:$0xf]
    %v74 = vld [vmem:[%s1 + $0x60] sm:$0xf]
    %v75 = vld [vmem:[%s1 + $0x64] sm:$0xf]
    %v76 = vld [vmem:[%s1 + $0x68] sm:$0xf]
    %v77 = vld [vmem:[%s1 + $0x6c] sm:$0xf]
    %v78 = vld [vmem:[%s1 + $0x70] sm:$0xf]
    %v79 = vld [vmem:[%s1 + $0x74] sm:$0xf]
    %v80 = vld [vmem:[%s1 + $0x78] sm:$0xf]
    %v81 = vld [vmem:[%s1 + $0x7c] sm:$0xf]
    %v82 = vld [vmem:[%s2] sm:$0x1]
    %v84 = vlaneseq
    %v85 = vshrl.u32 %v84, 7
    %v86 = vsub.s32 0, %v85
    %v87 = vrot.slane %v82, %v86
    %v91 = vunpack.c.l.b16 %v48
    %v92 = vunpack.c.h.b16 %v48
    %v93 = vunpack.c.l.b16 %v49
    %v94 = vunpack.c.h.b16 %v49
    %v95 = vpack.c.b16 %v93, %v91
    %v96 = vpack.c.b16 %v94, %v92
    %v131 = vunpack.c.l.b16 %v50
    %v132 = vunpack.c.l.b16 %v51
    %v133 = vunpack.c.l.b16 %v52
    %v134 = vunpack.c.l.b16 %v53
    %v135 = vunpack.c.l.b16 %v54
    %v136 = vunpack.c.l.b16 %v55
    %v137 = vunpack.c.l.b16 %v56
    %v138 = vunpack.c.l.b16 %v57
    %v139 = vunpack.c.l.b16 %v58
    %v140 = vunpack.c.l.b16 %v59
    %v141 = vunpack.c.l.b16 %v60
    %v142 = vunpack.c.l.b16 %v61
    %v143 = vunpack.c.l.b16 %v62
    %v144 = vunpack.c.l.b16 %v63
    %v145 = vunpack.c.l.b16 %v64
    %v146 = vunpack.c.l.b16 %v65
    %v147 = vunpack.c.l.b16 %v66
    %v148 = vunpack.c.l.b16 %v67
    %v149 = vunpack.c.l.b16 %v68
    %v150 = vunpack.c.l.b16 %v69
    %v151 = vunpack.c.l.b16 %v70
    %v152 = vunpack.c.l.b16 %v71
    %v153 = vunpack.c.l.b16 %v72
    %v154 = vunpack.c.l.b16 %v73
    %v155 = vunpack.c.l.b16 %v74
    %v156 = vunpack.c.l.b16 %v75
    %v157 = vunpack.c.l.b16 %v76
    %v158 = vunpack.c.l.b16 %v77
    %v159 = vunpack.c.l.b16 %v78
    %v160 = vunpack.c.l.b16 %v79
    %v161 = vunpack.c.l.b16 %v80
    %v162 = vunpack.c.l.b16 %v81
    %v163 = vpack.c.b16 %v132, %v131
    %v164 = vpack.c.b16 %v134, %v133
    %v165 = vpack.c.b16 %v136, %v135
    %v166 = vpack.c.b16 %v138, %v137
    %v167 = vpack.c.b16 %v140, %v139
    %v168 = vpack.c.b16 %v142, %v141
    %v169 = vpack.c.b16 %v144, %v143
    %v170 = vpack.c.b16 %v146, %v145
    %v171 = vpack.c.b16 %v148, %v147
    %v172 = vpack.c.b16 %v150, %v149
    %v173 = vpack.c.b16 %v152, %v151
    %v174 = vpack.c.b16 %v154, %v153
    %v175 = vpack.c.b16 %v156, %v155
    %v176 = vpack.c.b16 %v158, %v157
    %v177 = vpack.c.b16 %v160, %v159
    %v178 = vpack.c.b16 %v162, %v161
    %195 = vmatprep.subr.bf16.mxu0 0
    %196 = vmatpush1.bf16.msra.mxu0 %v163
    %197 = vmatprep.subr.bf16.mxu0 0
    %198 = vmatpush1.bf16.msra.mxu0 %v164
    %199 = vmatprep.subr.bf16.mxu0 0
    %200 = vmatpush1.bf16.msra.mxu0 %v165
    %201 = vmatprep.subr.bf16.mxu0 0
    %202 = vmatpush1.bf16.msra.mxu0 %v166
    %203 = vmatprep.subr.bf16.mxu0 0
    %204 = vmatpush1.bf16.msra.mxu0 %v167
    %205 = vmatprep.subr.bf16.mxu0 0
    %206 = vmatpush1.bf16.msra.mxu0 %v168
    %207 = vmatprep.subr.bf16.mxu0 0
    %208 = vmatpush1.bf16.msra.mxu0 %v169
    %209 = vmatprep.subr.bf16.mxu0 0
    %210 = vmatpush1.bf16.msra.mxu0 %v170
    %211 = vmatprep.subr.bf16.mxu0 0
    %212 = vmatpush1.bf16.msra.mxu0 %v171
    %213 = vmatprep.subr.bf16.mxu0 0
    %214 = vmatpush1.bf16.msra.mxu0 %v172
    %215 = vmatprep.subr.bf16.mxu0 0
    %216 = vmatpush1.bf16.msra.mxu0 %v173
    %217 = vmatprep.subr.bf16.mxu0 0
    %218 = vmatpush1.bf16.msra.mxu0 %v174
    %219 = vmatprep.subr.bf16.mxu0 0
    %220 = vmatpush1.bf16.msra.mxu0 %v175
    %221 = vmatprep.subr.bf16.mxu0 0
    %222 = vmatpush1.bf16.msra.mxu0 %v176
    %223 = vmatprep.subr.bf16.mxu0 0
    %224 = vmatpush1.bf16.msra.mxu0 %v177
    %225 = vmatprep.subr.bf16.mxu0 0
    %226 = vmatpush1.bf16.msra.mxu0 %v178
    %227 = vmatprep.mubr.bf16.mxu0 %v96
    %228 = vmatmul.mubr.bf16.gmra.mrb[0].mxu0 %v95
    %v229 = vpop.f32.mrb[0].mxu0
    %v230 = vadd.f32 %v87, %v229
    %v231 = vpop.f32.mrb[0].mxu0
    %v232 = vpop.f32.mrb[0].mxu0
    %v233 = vadd.f32 %v87, %v232
    %v234 = vpop.f32.mrb[0].mxu0
    %235 = vdwg.mxu0
    %vm236 = vcmp.gt.f32.partialorder %v230, 0.0
    %vm237 = vcmp.gt.f32.partialorder %v233, 0.0
    %v238 = vmul.f32 %v230, 0.2
    %v239 = vmul.f32 %v233, 0.2
    %v240 = vsel %vm236, %v230, %v238
    %v241 = vsel %vm237, %v233, %v239
    %v242 = vpack.c.bf16 %v241, %v240
    %v243 = vld [vmem:[%s3] sm:$0xff]
    %v244 = vld [vmem:[%s3 + $0x8] sm:$0xff]
    %v245 = vld [vmem:[%s3 + $0x10] sm:$0xff]
    %v246 = vld [vmem:[%s3 + $0x18] sm:$0xff]
    %v247 = vld [vmem:[%s3 + $0x20] sm:$0xff]
    %v248 = vld [vmem:[%s3 + $0x28] sm:$0xff]
    %v249 = vld [vmem:[%s3 + $0x30] sm:$0xff]
    %v250 = vld [vmem:[%s3 + $0x38] sm:$0xff]
    %v251 = vld [vmem:[%s3 + $0x40] sm:$0xff]
    %v252 = vld [vmem:[%s3 + $0x48] sm:$0xff]
    %v253 = vld [vmem:[%s3 + $0x50] sm:$0xff]
    %v254 = vld [vmem:[%s3 + $0x58] sm:$0xff]
    %v255 = vld [vmem:[%s3 + $0x60] sm:$0xff]
    %v256 = vld [vmem:[%s3 + $0x68] sm:$0xff]
    %v257 = vld [vmem:[%s3 + $0x70] sm:$0xff]
    %v258 = vld [vmem:[%s3 + $0x78] sm:$0xff]
    %v259 = vld [vmem:[%s4] sm:$0xff]
    %v261 = vlaneseq
    %v262 = vshrl.u32 %v261, 7
    %v263 = vsub.s32 0, %v262
    %v264 = vrot.slane %v259, %v263
    %v265 = vlaneseq
    %v266 = vshrl.u32 %v265, 7
    %v267 = vsub.s32 1, %v266
    %v268 = vrot.slane %v259, %v267
    %v269 = vlaneseq
    %v270 = vshrl.u32 %v269, 7
    %v271 = vsub.s32 2, %v270
    %v272 = vrot.slane %v259, %v271
    %v273 = vlaneseq
    %v274 = vshrl.u32 %v273, 7
    %v275 = vsub.s32 3, %v274
    %v276 = vrot.slane %v259, %v275
    %v277 = vlaneseq
    %v278 = vshrl.u32 %v277, 7
    %v279 = vsub.s32 4, %v278
    %v280 = vrot.slane %v259, %v279
    %v281 = vlaneseq
    %v282 = vshrl.u32 %v281, 7
    %v283 = vsub.s32 5, %v282
    %v284 = vrot.slane %v259, %v283
    %v285 = vlaneseq
    %v286 = vshrl.u32 %v285, 7
    %v287 = vsub.s32 6, %v286
    %v288 = vrot.slane %v259, %v287
    %v289 = vlaneseq
    %v290 = vshrl.u32 %v289, 7
    %v291 = vsub.s32 7, %v290
    %v292 = vrot.slane %v259, %v291
    %v317 = vunpack.c.l.b16 %v243
    %v318 = vunpack.c.h.b16 %v243
    %v319 = vunpack.c.l.b16 %v244
    %v320 = vunpack.c.h.b16 %v244
    %v321 = vunpack.c.l.b16 %v245
    %v322 = vunpack.c.h.b16 %v245
    %v323 = vunpack.c.l.b16 %v246
    %v324 = vunpack.c.h.b16 %v246
    %v325 = vunpack.c.l.b16 %v247
    %v326 = vunpack.c.h.b16 %v247
    %v327 = vunpack.c.l.b16 %v248
    %v328 = vunpack.c.h.b16 %v248
    %v329 = vunpack.c.l.b16 %v249
    %v330 = vunpack.c.h.b16 %v249
    %v331 = vunpack.c.l.b16 %v250
    %v332 = vunpack.c.h.b16 %v250
    %v333 = vunpack.c.l.b16 %v251
    %v334 = vunpack.c.h.b16 %v251
    %v335 = vunpack.c.l.b16 %v252
    %v336 = vunpack.c.h.b16 %v252
    %v337 = vunpack.c.l.b16 %v253
    %v338 = vunpack.c.h.b16 %v253
    %v339 = vunpack.c.l.b16 %v254
    %v340 = vunpack.c.h.b16 %v254
    %v341 = vunpack.c.l.b16 %v255
    %v342 = vunpack.c.h.b16 %v255
    %v343 = vunpack.c.l.b16 %v256
    %v344 = vunpack.c.h.b16 %v256
    %v345 = vunpack.c.l.b16 %v257
    %v346 = vunpack.c.h.b16 %v257
    %v347 = vunpack.c.l.b16 %v258
    %v348 = vunpack.c.h.b16 %v258
    %v349 = vpack.c.b16 %v325, %v317
    %v350 = vpack.c.b16 %v326, %v318
    %v351 = vpack.c.b16 %v327, %v319
    %v352 = vpack.c.b16 %v328, %v320
    %v353 = vpack.c.b16 %v329, %v321
    %v354 = vpack.c.b16 %v330, %v322
    %v355 = vpack.c.b16 %v331, %v323
    %v356 = vpack.c.b16 %v332, %v324
    %v357 = vpack.c.b16 %v341, %v333
    %v358 = vpack.c.b16 %v342, %v334
    %v359 = vpack.c.b16 %v343, %v335
    %v360 = vpack.c.b16 %v344, %v336
    %v361 = vpack.c.b16 %v345, %v337
    %v362 = vpack.c.b16 %v346, %v338
    %v363 = vpack.c.b16 %v347, %v339
    %v364 = vpack.c.b16 %v348, %v340
    %vm381 = vcmask 261120
    %v383 = vsel %vm381, %v242, 0
    %385 = vmatprep.subr.bf16.mxu0 %v350
    %386 = vmatpush1.bf16.msra.mxu0 %v349
    %387 = vmatprep.subr.bf16.mxu0 %v358
    %388 = vmatpush1.bf16.msra.mxu0 %v357
    %389 = vmatprep.subr.bf16.mxu0 0
    %390 = vmatpush1.bf16.msra.mxu0 0
    %391 = vmatprep.subr.bf16.mxu0 0
    %392 = vmatpush1.bf16.msra.mxu0 0
    %393 = vmatprep.subr.bf16.mxu0 0
    %394 = vmatpush1.bf16.msra.mxu0 0
    %395 = vmatprep.subr.bf16.mxu0 0
    %396 = vmatpush1.bf16.msra.mxu0 0
    %397 = vmatprep.subr.bf16.mxu0 0
    %398 = vmatpush1.bf16.msra.mxu0 0
    %399 = vmatprep.subr.bf16.mxu0 0
    %400 = vmatpush1.bf16.msra.mxu0 0
    %401 = vmatprep.subr.bf16.mxu0 0
    %402 = vmatpush1.bf16.msra.mxu0 0
    %403 = vmatprep.subr.bf16.mxu0 0
    %404 = vmatpush1.bf16.msra.mxu0 0
    %405 = vmatprep.subr.bf16.mxu0 0
    %406 = vmatpush1.bf16.msra.mxu0 0
    %407 = vmatprep.subr.bf16.mxu0 0
    %408 = vmatpush1.bf16.msra.mxu0 0
    %409 = vmatprep.subr.bf16.mxu0 0
    %410 = vmatpush1.bf16.msra.mxu0 0
    %411 = vmatprep.subr.bf16.mxu0 0
    %412 = vmatpush1.bf16.msra.mxu0 0
    %413 = vmatprep.subr.bf16.mxu0 0
    %414 = vmatpush1.bf16.msra.mxu0 0
    %415 = vmatprep.subr.bf16.mxu0 0
    %416 = vmatpush1.bf16.msra.mxu0 0
    %417 = vmatprep.mubr.bf16.mxu0 0
    %418 = vmatmul.mubr.bf16.gmra.mrb[0].mxu0 %v383
    %v419 = vpop.f32.mrb[0].mxu0
    %v420 = vadd.f32 %v264, %v419
    %v421 = vpop.f32.mrb[0].mxu0
    %v422 = vadd.f32 %v268, %v421
    %v423 = vpop.f32.mrb[0].mxu0
    %v424 = vadd.f32 %v264, %v423
    %v425 = vpop.f32.mrb[0].mxu0
    %v426 = vadd.f32 %v268, %v425
    %427 = vdwg.mxu0
    %428 = vmatprep.subr.bf16.mxu0 %v352
    %429 = vmatpush1.bf16.msra.mxu0 %v351
    %430 = vmatprep.subr.bf16.mxu0 %v360
    %431 = vmatpush1.bf16.msra.mxu0 %v359
    %432 = vmatprep.subr.bf16.mxu0 0
    %433 = vmatpush1.bf16.msra.mxu0 0
    %434 = vmatprep.subr.bf16.mxu0 0
    %435 = vmatpush1.bf16.msra.mxu0 0
    %436 = vmatprep.subr.bf16.mxu0 0
    %437 = vmatpush1.bf16.msra.mxu0 0
    %438 = vmatprep.subr.bf16.mxu0 0
    %439 = vmatpush1.bf16.msra.mxu0 0
    %440 = vmatprep.subr.bf16.mxu0 0
    %441 = vmatpush1.bf16.msra.mxu0 0
    %442 = vmatprep.subr.bf16.mxu0 0
    %443 = vmatpush1.bf16.msra.mxu0 0
    %444 = vmatprep.subr.bf16.mxu0 0
    %445 = vmatpush1.bf16.msra.mxu0 0
    %446 = vmatprep.subr.bf16.mxu0 0
    %447 = vmatpush1.bf16.msra.mxu0 0
    %448 = vmatprep.subr.bf16.mxu0 0
    %449 = vmatpush1.bf16.msra.mxu0 0
    %450 = vmatprep.subr.bf16.mxu0 0
    %451 = vmatpush1.bf16.msra.mxu0 0
    %452 = vmatprep.subr.bf16.mxu0 0
    %453 = vmatpush1.bf16.msra.mxu0 0
    %454 = vmatprep.subr.bf16.mxu0 0
    %455 = vmatpush1.bf16.msra.mxu0 0
    %456 = vmatprep.subr.bf16.mxu0 0
    %457 = vmatpush1.bf16.msra.mxu0 0
    %458 = vmatprep.subr.bf16.mxu0 0
    %459 = vmatpush1.bf16.msra.mxu0 0
    %460 = vmatprep.mubr.bf16.mxu0 0
    %461 = vmatmul.mubr.bf16.gmra.mrb[0].mxu0 %v383
    %v462 = vpop.f32.mrb[0].mxu0
    %v463 = vadd.f32 %v272, %v462
    %v464 = vpop.f32.mrb[0].mxu0
    %v465 = vadd.f32 %v276, %v464
    %v466 = vpop.f32.mrb[0].mxu0
    %v467 = vadd.f32 %v272, %v466
    %v468 = vpop.f32.mrb[0].mxu0
    %v469 = vadd.f32 %v276, %v468
    %470 = vdwg.mxu0
    %471 = vmatprep.subr.bf16.mxu0 %v354
    %472 = vmatpush1.bf16.msra.mxu0 %v353
    %473 = vmatprep.subr.bf16.mxu0 %v362
    %474 = vmatpush1.bf16.msra.mxu0 %v361
    %475 = vmatprep.subr.bf16.mxu0 0
    %476 = vmatpush1.bf16.msra.mxu0 0
    %477 = vmatprep.subr.bf16.mxu0 0
    %478 = vmatpush1.bf16.msra.mxu0 0
    %479 = vmatprep.subr.bf16.mxu0 0
    %480 = vmatpush1.bf16.msra.mxu0 0
    %481 = vmatprep.subr.bf16.mxu0 0
    %482 = vmatpush1.bf16.msra.mxu0 0
    %483 = vmatprep.subr.bf16.mxu0 0
    %484 = vmatpush1.bf16.msra.mxu0 0
    %485 = vmatprep.subr.bf16.mxu0 0
    %486 = vmatpush1.bf16.msra.mxu0 0
    %487 = vmatprep.subr.bf16.mxu0 0
    %488 = vmatpush1.bf16.msra.mxu0 0
    %489 = vmatprep.subr.bf16.mxu0 0
    %490 = vmatpush1.bf16.msra.mxu0 0
    %491 = vmatprep.subr.bf16.mxu0 0
    %492 = vmatpush1.bf16.msra.mxu0 0
    %493 = vmatprep.subr.bf16.mxu0 0
    %494 = vmatpush1.bf16.msra.mxu0 0
    %495 = vmatprep.subr.bf16.mxu0 0
    %496 = vmatpush1.bf16.msra.mxu0 0
    %497 = vmatprep.subr.bf16.mxu0 0
    %498 = vmatpush1.bf16.msra.mxu0 0
    %499 = vmatprep.subr.bf16.mxu0 0
    %500 = vmatpush1.bf16.msra.mxu0 0
    %501 = vmatprep.subr.bf16.mxu0 0
    %502 = vmatpush1.bf16.msra.mxu0 0
    %503 = vmatprep.mubr.bf16.mxu0 0
    %504 = vmatmul.mubr.bf16.gmra.mrb[0].mxu0 %v383
    %v505 = vpop.f32.mrb[0].mxu0
    %v506 = vadd.f32 %v280, %v505
    %v507 = vpop.f32.mrb[0].mxu0
    %v508 = vadd.f32 %v284, %v507
    %v509 = vpop.f32.mrb[0].mxu0
    %v510 = vadd.f32 %v280, %v509
    %v511 = vpop.f32.mrb[0].mxu0
    %v512 = vadd.f32 %v284, %v511
    %513 = vdwg.mxu0
    %514 = vmatprep.subr.bf16.mxu0 %v356
    %515 = vmatpush1.bf16.msra.mxu0 %v355
    %516 = vmatprep.subr.bf16.mxu0 %v364
    %517 = vmatpush1.bf16.msra.mxu0 %v363
    %518 = vmatprep.subr.bf16.mxu0 0
    %519 = vmatpush1.bf16.msra.mxu0 0
    %520 = vmatprep.subr.bf16.mxu0 0
    %521 = vmatpush1.bf16.msra.mxu0 0
    %522 = vmatprep.subr.bf16.mxu0 0
    %523 = vmatpush1.bf16.msra.mxu0 0
    %524 = vmatprep.subr.bf16.mxu0 0
    %525 = vmatpush1.bf16.msra.mxu0 0
    %526 = vmatprep.subr.bf16.mxu0 0
    %527 = vmatpush1.bf16.msra.mxu0 0
    %528 = vmatprep.subr.bf16.mxu0 0
    %529 = vmatpush1.bf16.msra.mxu0 0
    %530 = vmatprep.subr.bf16.mxu0 0
    %531 = vmatpush1.bf16.msra.mxu0 0
    %532 = vmatprep.subr.bf16.mxu0 0
    %533 = vmatpush1.bf16.msra.mxu0 0
    %534 = vmatprep.subr.bf16.mxu0 0
    %535 = vmatpush1.bf16.msra.mxu0 0
    %536 = vmatprep.subr.bf16.mxu0 0
    %537 = vmatpush1.bf16.msra.mxu0 0
    %538 = vmatprep.subr.bf16.mxu0 0
    %539 = vmatpush1.bf16.msra.mxu0 0
    %540 = vmatprep.subr.bf16.mxu0 0
    %541 = vmatpush1.bf16.msra.mxu0 0
    %542 = vmatprep.subr.bf16.mxu0 0
    %543 = vmatpush1.bf16.msra.mxu0 0
    %544 = vmatprep.subr.bf16.mxu0 0
    %545 = vmatpush1.bf16.msra.mxu0 0
    %546 = vmatprep.mubr.bf16.mxu0 0
    %547 = vmatmul.mubr.bf16.gmra.mrb[0].mxu0 %v383
    %v548 = vpop.f32.mrb[0].mxu0
    %v549 = vadd.f32 %v288, %v548
    %v550 = vpop.f32.mrb[0].mxu0
    %v551 = vadd.f32 %v292, %v550
    %v552 = vpop.f32.mrb[0].mxu0
    %v553 = vadd.f32 %v288, %v552
    %v554 = vpop.f32.mrb[0].mxu0
    %v555 = vadd.f32 %v292, %v554
    %556 = vdwg.mxu0
    %v557 = vadd.f32 %v420, %v424
    %v558 = vrot.slane %v557, 4
    %v559 = vadd.f32 %v557, %v558
    %v560 = vrot.slane %v559, 2
    %v561 = vadd.f32 %v559, %v560
    %v562 = vrot.slane %v561, 1
    %v563 = vadd.f32 %v561, %v562
    %v564 = vadd.f32 %v422, %v426
    %v565 = vrot.slane %v564, 4
    %v566 = vadd.f32 %v564, %v565
    %v567 = vrot.slane %v566, 2
    %v568 = vadd.f32 %v566, %v567
    %v569 = vrot.slane %v568, 1
    %v570 = vadd.f32 %v568, %v569
    %v571 = vadd.f32 %v463, %v467
    %v572 = vrot.slane %v571, 4
    %v573 = vadd.f32 %v571, %v572
    %v574 = vrot.slane %v573, 2
    %v575 = vadd.f32 %v573, %v574
    %v576 = vrot.slane %v575, 1
    %v577 = vadd.f32 %v575, %v576
    %v578 = vadd.f32 %v465, %v469
    %v579 = vrot.slane %v578, 4
    %v580 = vadd.f32 %v578, %v579
    %v581 = vrot.slane %v580, 2
    %v582 = vadd.f32 %v580, %v581
    %v583 = vrot.slane %v582, 1
    %v584 = vadd.f32 %v582, %v583
    %v585 = vadd.f32 %v506, %v510
    %v586 = vrot.slane %v585, 4
    %v587 = vadd.f32 %v585, %v586
    %v588 = vrot.slane %v587, 2
    %v589 = vadd.f32 %v587, %v588
    %v590 = vrot.slane %v589, 1
    %v591 = vadd.f32 %v589, %v590
    %v592 = vadd.f32 %v508, %v512
    %v593 = vrot.slane %v592, 4
    %v594 = vadd.f32 %v592, %v593
    %v595 = vrot.slane %v594, 2
    %v596 = vadd.f32 %v594, %v595
    %v597 = vrot.slane %v596, 1
    %v598 = vadd.f32 %v596, %v597
    %v599 = vadd.f32 %v549, %v553
    %v600 = vrot.slane %v599, 4
    %v601 = vadd.f32 %v599, %v600
    %v602 = vrot.slane %v601, 2
    %v603 = vadd.f32 %v601, %v602
    %v604 = vrot.slane %v603, 1
    %v605 = vadd.f32 %v603, %v604
    %v606 = vadd.f32 %v551, %v555
    %v607 = vrot.slane %v606, 4
    %v608 = vadd.f32 %v606, %v607
    %v609 = vrot.slane %v608, 2
    %v610 = vadd.f32 %v608, %v609
    %v611 = vrot.slane %v610, 1
    %v612 = vadd.f32 %v610, %v611
    %v613 = vmul.f32 %v420, %v420
    %v614 = vmul.f32 %v422, %v422
    %v615 = vmul.f32 %v463, %v463
    %v616 = vmul.f32 %v465, %v465
    %v617 = vmul.f32 %v506, %v506
    %v618 = vmul.f32 %v508, %v508
    %v619 = vmul.f32 %v549, %v549
    %v620 = vmul.f32 %v551, %v551
    %v621 = vmul.f32 %v424, %v424
    %v622 = vmul.f32 %v426, %v426
    %v623 = vmul.f32 %v467, %v467
    %v624 = vmul.f32 %v469, %v469
    %v625 = vmul.f32 %v510, %v510
    %v626 = vmul.f32 %v512, %v512
    %v627 = vmul.f32 %v553, %v553
    %v628 = vmul.f32 %v555, %v555
    %v629 = vadd.f32 %v613, %v621
    %v630 = vrot.slane %v629, 4
    %v631 = vadd.f32 %v629, %v630
    %v632 = vrot.slane %v631, 2
    %v633 = vadd.f32 %v631, %v632
    %v634 = vrot.slane %v633, 1
    %v635 = vadd.f32 %v633, %v634
    %v636 = vadd.f32 %v614, %v622
    %v637 = vrot.slane %v636, 4
    %v638 = vadd.f32 %v636, %v637
    %v639 = vrot.slane %v638, 2
    %v640 = vadd.f32 %v638, %v639
    %v641 = vrot.slane %v640, 1
    %v642 = vadd.f32 %v640, %v641
    %v643 = vadd.f32 %v615, %v623
    %v644 = vrot.slane %v643, 4
    %v645 = vadd.f32 %v643, %v644
    %v646 = vrot.slane %v645, 2
    %v647 = vadd.f32 %v645, %v646
    %v648 = vrot.slane %v647, 1
    %v649 = vadd.f32 %v647, %v648
    %v650 = vadd.f32 %v616, %v624
    %v651 = vrot.slane %v650, 4
    %v652 = vadd.f32 %v650, %v651
    %v653 = vrot.slane %v652, 2
    %v654 = vadd.f32 %v652, %v653
    %v655 = vrot.slane %v654, 1
    %v656 = vadd.f32 %v654, %v655
    %v657 = vadd.f32 %v617, %v625
    %v658 = vrot.slane %v657, 4
    %v659 = vadd.f32 %v657, %v658
    %v660 = vrot.slane %v659, 2
    %v661 = vadd.f32 %v659, %v660
    %v662 = vrot.slane %v661, 1
    %v663 = vadd.f32 %v661, %v662
    %v664 = vadd.f32 %v618, %v626
    %v665 = vrot.slane %v664, 4
    %v666 = vadd.f32 %v664, %v665
    %v667 = vrot.slane %v666, 2
    %v668 = vadd.f32 %v666, %v667
    %v669 = vrot.slane %v668, 1
    %v670 = vadd.f32 %v668, %v669
    %v671 = vadd.f32 %v619, %v627
    %v672 = vrot.slane %v671, 4
    %v673 = vadd.f32 %v671, %v672
    %v674 = vrot.slane %v673, 2
    %v675 = vadd.f32 %v673, %v674
    %v676 = vrot.slane %v675, 1
    %v677 = vadd.f32 %v675, %v676
    %v678 = vadd.f32 %v620, %v628
    %v679 = vrot.slane %v678, 4
    %v680 = vadd.f32 %v678, %v679
    %v681 = vrot.slane %v680, 2
    %v682 = vadd.f32 %v680, %v681
    %v683 = vrot.slane %v682, 1
    %v684 = vadd.f32 %v682, %v683
    %v685 = vmul.f32 %v563, 0.0625
    %v686 = vmul.f32 %v570, 0.0625
    %v687 = vmul.f32 %v577, 0.0625
    %v688 = vmul.f32 %v584, 0.0625
    %v689 = vmul.f32 %v591, 0.0625
    %v690 = vmul.f32 %v598, 0.0625
    %v691 = vmul.f32 %v605, 0.0625
    %v692 = vmul.f32 %v612, 0.0625
    %v693 = vmul.f32 %v635, 0.0625
    %v694 = vmul.f32 %v642, 0.0625
    %v695 = vmul.f32 %v649, 0.0625
    %v696 = vmul.f32 %v656, 0.0625
    %v697 = vmul.f32 %v663, 0.0625
    %v698 = vmul.f32 %v670, 0.0625
    %v699 = vmul.f32 %v677, 0.0625
    %v700 = vmul.f32 %v684, 0.0625
    %v701 = vmul.f32 %v685, %v685
    %v702 = vmul.f32 %v686, %v686
    %v703 = vmul.f32 %v687, %v687
    %v704 = vmul.f32 %v688, %v688
    %v705 = vmul.f32 %v689, %v689
    %v706 = vmul.f32 %v690, %v690
    %v707 = vmul.f32 %v691, %v691
    %v708 = vmul.f32 %v692, %v692
    %v709 = vsub.f32 %v693, %v701
    %v710 = vsub.f32 %v694, %v702
    %v711 = vsub.f32 %v695, %v703
    %v712 = vsub.f32 %v696, %v704
    %v713 = vsub.f32 %v697, %v705
    %v714 = vsub.f32 %v698, %v706
    %v715 = vsub.f32 %v699, %v707
    %v716 = vsub.f32 %v700, %v708
    %v717 = vmax.f32 %v709, 0.0
    %v718 = vmax.f32 %v710, 0.0
    %v719 = vmax.f32 %v711, 0.0
    %v720 = vmax.f32 %v712, 0.0
    %v721 = vmax.f32 %v713, 0.0
    %v722 = vmax.f32 %v714, 0.0
    %v723 = vmax.f32 %v715, 0.0
    %v724 = vmax.f32 %v716, 0.0
    %v725 = vadd.f32 %v717, 1e-05
    %v726 = vadd.f32 %v718, 1e-05
    %v727 = vadd.f32 %v719, 1e-05
    %v728 = vadd.f32 %v720, 1e-05
    %v729 = vadd.f32 %v721, 1e-05
    %v730 = vadd.f32 %v722, 1e-05
    %v731 = vadd.f32 %v723, 1e-05
    %v732 = vadd.f32 %v724, 1e-05
    %v733 = vrsqrt.pop %v725
    %v734 = vrsqrt.pop %v726
    %v735 = vrsqrt.pop %v727
    %v736 = vrsqrt.pop %v728
    %v737 = vrsqrt.pop %v729
    %v738 = vrsqrt.pop %v730
    %v739 = vrsqrt.pop %v731
    %v740 = vrsqrt.pop %v732
    %v741 = vld [vmem:[%s5] sm:$0xff]
    %v743 = vlaneseq
    %v744 = vshrl.u32 %v743, 7
    %v745 = vsub.s32 0, %v744
    %v746 = vrot.slane %v741, %v745
    %v747 = vlaneseq
    %v748 = vshrl.u32 %v747, 7
    %v749 = vsub.s32 1, %v748
    %v750 = vrot.slane %v741, %v749
    %v751 = vlaneseq
    %v752 = vshrl.u32 %v751, 7
    %v753 = vsub.s32 2, %v752
    %v754 = vrot.slane %v741, %v753
    %v755 = vlaneseq
    %v756 = vshrl.u32 %v755, 7
    %v757 = vsub.s32 3, %v756
    %v758 = vrot.slane %v741, %v757
    %v759 = vlaneseq
    %v760 = vshrl.u32 %v759, 7
    %v761 = vsub.s32 4, %v760
    %v762 = vrot.slane %v741, %v761
    %v763 = vlaneseq
    %v764 = vshrl.u32 %v763, 7
    %v765 = vsub.s32 5, %v764
    %v766 = vrot.slane %v741, %v765
    %v767 = vlaneseq
    %v768 = vshrl.u32 %v767, 7
    %v769 = vsub.s32 6, %v768
    %v770 = vrot.slane %v741, %v769
    %v771 = vlaneseq
    %v772 = vshrl.u32 %v771, 7
    %v773 = vsub.s32 7, %v772
    %v774 = vrot.slane %v741, %v773
    %v783 = vmul.f32 %v733, %v746
    %v784 = vmul.f32 %v734, %v750
    %v785 = vmul.f32 %v735, %v754
    %v786 = vmul.f32 %v736, %v758
    %v787 = vmul.f32 %v737, %v762
    %v788 = vmul.f32 %v738, %v766
    %v789 = vmul.f32 %v739, %v770
    %v790 = vmul.f32 %v740, %v774
    %v791 = vld [vmem:[%s6] sm:$0xff]
    %v792 = vmul.f32 %v685, %v783
    %v793 = vmul.f32 %v686, %v784
    %v794 = vmul.f32 %v687, %v785
    %v795 = vmul.f32 %v688, %v786
    %v796 = vmul.f32 %v689, %v787
    %v797 = vmul.f32 %v690, %v788
    %v798 = vmul.f32 %v691, %v789
    %v799 = vmul.f32 %v692, %v790
    %v808 = vcombine.low %v792, %v793
    %v809 = vcombine.low %v794, %v795
    %v810 = vcombine.low %v796, %v797
    %v811 = vcombine.low %v798, %v799
    %v813 = vunpack.c.l.s4 1966171168
    %v814 = vunpack.c.0.s8 %v813
    %v815 = vlaneseq
    %v816 = vshrl.u32 %v815, 7
    %v817 = vsub.s32 %v814, %v816
    %v818 = vrot.slane %v808, %v817
    %v820 = vunpack.c.l.s4 1966171168
    %v821 = vunpack.c.0.s8 %v820
    %v822 = vlaneseq
    %v823 = vshrl.u32 %v822, 7
    %v824 = vsub.s32 %v821, %v823
    %v825 = vrot.slane %v809, %v824
    %v827 = vunpack.c.l.s4 1966171168
    %v828 = vunpack.c.0.s8 %v827
    %v829 = vlaneseq
    %v830 = vshrl.u32 %v829, 7
    %v831 = vsub.s32 %v828, %v830
    %v832 = vrot.slane %v810, %v831
    %v834 = vunpack.c.l.s4 1966171168
    %v835 = vunpack.c.0.s8 %v834
    %v836 = vlaneseq
    %v837 = vshrl.u32 %v836, 7
    %v838 = vsub.s32 %v835, %v837
    %v839 = vrot.slane %v811, %v838
    %v840 = vcombine.low %v818, %v825
    %v841 = vcombine.low %v832, %v839
    %v843 = vunpack.c.l.s4 1966171168
    %v844 = vunpack.c.0.s8 %v843
    %v845 = vlaneseq
    %v846 = vshrl.u32 %v845, 7
    %v847 = vsub.s32 %v844, %v846
    %v848 = vrot.slane %v840, %v847
    %v850 = vunpack.c.l.s4 1966171168
    %v851 = vunpack.c.0.s8 %v850
    %v852 = vlaneseq
    %v853 = vshrl.u32 %v852, 7
    %v854 = vsub.s32 %v851, %v853
    %v855 = vrot.slane %v841, %v854
    %v856 = vcombine.low %v848, %v855
    %v858 = vsub.f32 %v791, %v856
    %v859 = vlaneseq
    %v860 = vshrl.u32 %v859, 7
    %v861 = vsub.s32 0, %v860
    %v862 = vrot.slane %v783, %v861
    %v863 = vlaneseq
    %v864 = vshrl.u32 %v863, 7
    %v865 = vsub.s32 0, %v864
    %v866 = vrot.slane %v784, %v865
    %v867 = vlaneseq
    %v868 = vshrl.u32 %v867, 7
    %v869 = vsub.s32 0, %v868
    %v870 = vrot.slane %v785, %v869
    %v871 = vlaneseq
    %v872 = vshrl.u32 %v871, 7
    %v873 = vsub.s32 0, %v872
    %v874 = vrot.slane %v786, %v873
    %v875 = vlaneseq
    %v876 = vshrl.u32 %v875, 7
    %v877 = vsub.s32 0, %v876
    %v878 = vrot.slane %v787, %v877
    %v879 = vlaneseq
    %v880 = vshrl.u32 %v879, 7
    %v881 = vsub.s32 0, %v880
    %v882 = vrot.slane %v788, %v881
    %v883 = vlaneseq
    %v884 = vshrl.u32 %v883, 7
    %v885 = vsub.s32 0, %v884
    %v886 = vrot.slane %v789, %v885
    %v887 = vlaneseq
    %v888 = vshrl.u32 %v887, 7
    %v889 = vsub.s32 0, %v888
    %v890 = vrot.slane %v790, %v889
    %v891 = vmul.f32 %v420, %v862
    %v892 = vmul.f32 %v422, %v866
    %v893 = vmul.f32 %v463, %v870
    %v894 = vmul.f32 %v465, %v874
    %v895 = vmul.f32 %v506, %v878
    %v896 = vmul.f32 %v508, %v882
    %v897 = vmul.f32 %v549, %v886
    %v898 = vmul.f32 %v551, %v890
    %v899 = vmul.f32 %v424, %v862
    %v900 = vmul.f32 %v426, %v866
    %v901 = vmul.f32 %v467, %v870
    %v902 = vmul.f32 %v469, %v874
    %v903 = vmul.f32 %v510, %v878
    %v904 = vmul.f32 %v512, %v882
    %v905 = vmul.f32 %v553, %v886
    %v906 = vmul.f32 %v555, %v890
    %v908 = vlaneseq
    %v909 = vshrl.u32 %v908, 7
    %v910 = vsub.s32 0, %v909
    %v911 = vrot.slane %v858, %v910
    %v912 = vlaneseq
    %v913 = vshrl.u32 %v912, 7
    %v914 = vsub.s32 1, %v913
    %v915 = vrot.slane %v858, %v914
    %v916 = vlaneseq
    %v917 = vshrl.u32 %v916, 7
    %v918 = vsub.s32 2, %v917
    %v919 = vrot.slane %v858, %v918
    %v920 = vlaneseq
    %v921 = vshrl.u32 %v920, 7
    %v922 = vsub.s32 3, %v921
    %v923 = vrot.slane %v858, %v922
    %v924 = vlaneseq
    %v925 = vshrl.u32 %v924, 7
    %v926 = vsub.s32 4, %v925
    %v927 = vrot.slane %v858, %v926
    %v928 = vlaneseq
    %v929 = vshrl.u32 %v928, 7
    %v930 = vsub.s32 5, %v929
    %v931 = vrot.slane %v858, %v930
    %v932 = vlaneseq
    %v933 = vshrl.u32 %v932, 7
    %v934 = vsub.s32 6, %v933
    %v935 = vrot.slane %v858, %v934
    %v936 = vlaneseq
    %v937 = vshrl.u32 %v936, 7
    %v938 = vsub.s32 7, %v937
    %v939 = vrot.slane %v858, %v938
    %v948 = vadd.f32 %v891, %v911
    %v949 = vadd.f32 %v892, %v915
    %v950 = vadd.f32 %v893, %v919
    %v951 = vadd.f32 %v894, %v923
    %v952 = vadd.f32 %v895, %v927
    %v953 = vadd.f32 %v896, %v931
    %v954 = vadd.f32 %v897, %v935
    %v955 = vadd.f32 %v898, %v939
    %v956 = vadd.f32 %v899, %v911
    %v957 = vadd.f32 %v900, %v915
    %v958 = vadd.f32 %v901, %v919
    %v959 = vadd.f32 %v902, %v923
    %v960 = vadd.f32 %v903, %v927
    %v961 = vadd.f32 %v904, %v931
    %v962 = vadd.f32 %v905, %v935
    %v963 = vadd.f32 %v906, %v939
    %vm964 = vcmp.gt.f32.partialorder %v948, 0.0
    %vm965 = vcmp.gt.f32.partialorder %v949, 0.0
    %vm966 = vcmp.gt.f32.partialorder %v950, 0.0
    %vm967 = vcmp.gt.f32.partialorder %v951, 0.0
    %vm968 = vcmp.gt.f32.partialorder %v952, 0.0
    %vm969 = vcmp.gt.f32.partialorder %v953, 0.0
    %vm970 = vcmp.gt.f32.partialorder %v954, 0.0
    %vm971 = vcmp.gt.f32.partialorder %v955, 0.0
    %vm972 = vcmp.gt.f32.partialorder %v956, 0.0
    %vm973 = vcmp.gt.f32.partialorder %v957, 0.0
    %vm974 = vcmp.gt.f32.partialorder %v958, 0.0
    %vm975 = vcmp.gt.f32.partialorder %v959, 0.0
    %vm976 = vcmp.gt.f32.partialorder %v960, 0.0
    %vm977 = vcmp.gt.f32.partialorder %v961, 0.0
    %vm978 = vcmp.gt.f32.partialorder %v962, 0.0
    %vm979 = vcmp.gt.f32.partialorder %v963, 0.0
    %v980 = vmul.f32 %v948, 0.2
    %v981 = vmul.f32 %v949, 0.2
    %v982 = vmul.f32 %v950, 0.2
    %v983 = vmul.f32 %v951, 0.2
    %v984 = vmul.f32 %v952, 0.2
    %v985 = vmul.f32 %v953, 0.2
    %v986 = vmul.f32 %v954, 0.2
    %v987 = vmul.f32 %v955, 0.2
    %v988 = vmul.f32 %v956, 0.2
    %v989 = vmul.f32 %v957, 0.2
    %v990 = vmul.f32 %v958, 0.2
    %v991 = vmul.f32 %v959, 0.2
    %v992 = vmul.f32 %v960, 0.2
    %v993 = vmul.f32 %v961, 0.2
    %v994 = vmul.f32 %v962, 0.2
    %v995 = vmul.f32 %v963, 0.2
    %v996 = vsel %vm964, %v948, %v980
    %v997 = vsel %vm965, %v949, %v981
    %v998 = vsel %vm966, %v950, %v982
    %v999 = vsel %vm967, %v951, %v983
    %v1000 = vsel %vm968, %v952, %v984
    %v1001 = vsel %vm969, %v953, %v985
    %v1002 = vsel %vm970, %v954, %v986
    %v1003 = vsel %vm971, %v955, %v987
    %v1004 = vsel %vm972, %v956, %v988
    %v1005 = vsel %vm973, %v957, %v989
    %v1006 = vsel %vm974, %v958, %v990
    %v1007 = vsel %vm975, %v959, %v991
    %v1008 = vsel %vm976, %v960, %v992
    %v1009 = vsel %vm977, %v961, %v993
    %v1010 = vsel %vm978, %v962, %v994
    %v1011 = vsel %vm979, %v963, %v995
    %v1012 = vpack.c.bf16 %v1004, %v996
    %v1013 = vpack.c.bf16 %v1005, %v997
    %v1014 = vpack.c.bf16 %v1006, %v998
    %v1015 = vpack.c.bf16 %v1007, %v999
    %v1016 = vpack.c.bf16 %v1008, %v1000
    %v1017 = vpack.c.bf16 %v1009, %v1001
    %v1018 = vpack.c.bf16 %v1010, %v1002
    %v1019 = vpack.c.bf16 %v1011, %v1003
    %v1020 = vld [vmem:[#allocation2] sm:$0xf]
    %v1021 = vld [vmem:[#allocation2 + $0x4] sm:$0xf]
    %v1022 = vld [vmem:[#allocation2 + $0x8] sm:$0xf]
    %v1023 = vld [vmem:[#allocation2 + $0xc] sm:$0xf]
    %v1024 = vld [vmem:[#allocation2 + $0x10] sm:$0xf]
    %v1025 = vld [vmem:[#allocation2 + $0x14] sm:$0xf]
    %v1026 = vld [vmem:[#allocation2 + $0x18] sm:$0xf]
    %v1027 = vld [vmem:[#allocation2 + $0x1c] sm:$0xf]
    %v1028 = vld [vmem:[#allocation2 + $0x20] sm:$0xf]
    %v1029 = vld [vmem:[#allocation2 + $0x24] sm:$0xf]
    %v1030 = vld [vmem:[#allocation2 + $0x28] sm:$0xf]
    %v1031 = vld [vmem:[#allocation2 + $0x2c] sm:$0xf]
    %v1032 = vld [vmem:[#allocation2 + $0x30] sm:$0xf]
    %v1033 = vld [vmem:[#allocation2 + $0x34] sm:$0xf]
    %v1034 = vld [vmem:[#allocation2 + $0x38] sm:$0xf]
    %v1035 = vld [vmem:[#allocation2 + $0x3c] sm:$0xf]
    %v1036 = vld [vmem:[#allocation2 + $0x40] sm:$0xf]
    %v1037 = vld [vmem:[#allocation2 + $0x44] sm:$0xf]
    %v1038 = vld [vmem:[#allocation2 + $0x48] sm:$0xf]
    %v1039 = vld [vmem:[#allocation2 + $0x4c] sm:$0xf]
    %v1040 = vld [vmem:[#allocation2 + $0x50] sm:$0xf]
    %v1041 = vld [vmem:[#allocation2 + $0x54] sm:$0xf]
    %v1042 = vld [vmem:[#allocation2 + $0x58] sm:$0xf]
    %v1043 = vld [vmem:[#allocation2 + $0x5c] sm:$0xf]
    %v1044 = vld [vmem:[#allocation2 + $0x60] sm:$0xf]
    %v1045 = vld [vmem:[#allocation2 + $0x64] sm:$0xf]
    %v1046 = vld [vmem:[#allocation2 + $0x68] sm:$0xf]
    %v1047 = vld [vmem:[#allocation2 + $0x6c] sm:$0xf]
    %v1048 = vld [vmem:[#allocation2 + $0x70] sm:$0xf]
    %v1049 = vld [vmem:[#allocation2 + $0x74] sm:$0xf]
    %v1050 = vld [vmem:[#allocation2 + $0x78] sm:$0xf]
    %v1051 = vld [vmem:[#allocation2 + $0x7c] sm:$0xf]
    %v1052 = vld [vmem:[#allocation2 + $0x80] sm:$0xf]
    %v1053 = vld [vmem:[#allocation2 + $0x84] sm:$0xf]
    %v1054 = vld [vmem:[#allocation2 + $0x88] sm:$0xf]
    %v1055 = vld [vmem:[#allocation2 + $0x8c] sm:$0xf]
    %v1056 = vld [vmem:[#allocation2 + $0x90] sm:$0xf]
    %v1057 = vld [vmem:[#allocation2 + $0x94] sm:$0xf]
    %v1058 = vld [vmem:[#allocation2 + $0x98] sm:$0xf]
    %v1059 = vld [vmem:[#allocation2 + $0x9c] sm:$0xf]
    %v1060 = vld [vmem:[#allocation2 + $0xa0] sm:$0xf]
    %v1061 = vld [vmem:[#allocation2 + $0xa4] sm:$0xf]
    %v1062 = vld [vmem:[#allocation2 + $0xa8] sm:$0xf]
    %v1063 = vld [vmem:[#allocation2 + $0xac] sm:$0xf]
    %v1064 = vld [vmem:[#allocation2 + $0xb0] sm:$0xf]
    %v1065 = vld [vmem:[#allocation2 + $0xb4] sm:$0xf]
    %v1066 = vld [vmem:[#allocation2 + $0xb8] sm:$0xf]
    %v1067 = vld [vmem:[#allocation2 + $0xbc] sm:$0xf]
    %v1068 = vld [vmem:[#allocation2 + $0xc0] sm:$0xf]
    %v1069 = vld [vmem:[#allocation2 + $0xc4] sm:$0xf]
    %v1070 = vld [vmem:[#allocation2 + $0xc8] sm:$0xf]
    %v1071 = vld [vmem:[#allocation2 + $0xcc] sm:$0xf]
    %v1072 = vld [vmem:[#allocation2 + $0xd0] sm:$0xf]
    %v1073 = vld [vmem:[#allocation2 + $0xd4] sm:$0xf]
    %v1074 = vld [vmem:[#allocation2 + $0xd8] sm:$0xf]
    %v1075 = vld [vmem:[#allocation2 + $0xdc] sm:$0xf]
    %v1076 = vld [vmem:[#allocation2 + $0xe0] sm:$0xf]
    %v1077 = vld [vmem:[#allocation2 + $0xe4] sm:$0xf]
    %v1078 = vld [vmem:[#allocation2 + $0xe8] sm:$0xf]
    %v1079 = vld [vmem:[#allocation2 + $0xec] sm:$0xf]
    %v1080 = vld [vmem:[#allocation2 + $0xf0] sm:$0xf]
    %v1081 = vld [vmem:[#allocation2 + $0xf4] sm:$0xf]
    %v1082 = vld [vmem:[#allocation2 + $0xf8] sm:$0xf]
    %v1083 = vld [vmem:[#allocation2 + $0xfc] sm:$0xf]
    %v1084 = vld [vmem:[#allocation2 + $0x100] sm:$0xf]
    %v1085 = vld [vmem:[#allocation2 + $0x104] sm:$0xf]
    %v1086 = vld [vmem:[#allocation2 + $0x108] sm:$0xf]
    %v1087 = vld [vmem:[#allocation2 + $0x10c] sm:$0xf]
    %v1088 = vld [vmem:[#allocation2 + $0x110] sm:$0xf]
    %v1089 = vld [vmem:[#allocation2 + $0x114] sm:$0xf]
    %v1090 = vld [vmem:[#allocation2 + $0x118] sm:$0xf]
    %v1091 = vld [vmem:[#allocation2 + $0x11c] sm:$0xf]
    %v1092 = vld [vmem:[#allocation2 + $0x120] sm:$0xf]
    %v1093 = vld [vmem:[#allocation2 + $0x124] sm:$0xf]
    %v1094 = vld [vmem:[#allocation2 + $0x128] sm:$0xf]
    %v1095 = vld [vmem:[#allocation2 + $0x12c] sm:$0xf]
    %v1096 = vld [vmem:[#allocation2 + $0x130] sm:$0xf]
    %v1097 = vld [vmem:[#allocation2 + $0x134] sm:$0xf]
    %v1098 = vld [vmem:[#allocation2 + $0x138] sm:$0xf]
    %v1099 = vld [vmem:[#allocation2 + $0x13c] sm:$0xf]
    %v1100 = vld [vmem:[#allocation2 + $0x140] sm:$0xf]
    %v1101 = vld [vmem:[#allocation2 + $0x144] sm:$0xf]
    %v1102 = vld [vmem:[#allocation2 + $0x148] sm:$0xf]
    %v1103 = vld [vmem:[#allocation2 + $0x14c] sm:$0xf]
    %v1104 = vld [vmem:[#allocation2 + $0x150] sm:$0xf]
    %v1105 = vld [vmem:[#allocation2 + $0x154] sm:$0xf]
    %v1106 = vld [vmem:[#allocation2 + $0x158] sm:$0xf]
    %v1107 = vld [vmem:[#allocation2 + $0x15c] sm:$0xf]
    %v1108 = vld [vmem:[#allocation2 + $0x160] sm:$0xf]
    %v1109 = vld [vmem:[#allocation2 + $0x164] sm:$0xf]
    %v1110 = vld [vmem:[#allocation2 + $0x168] sm:$0xf]
    %v1111 = vld [vmem:[#allocation2 + $0x16c] sm:$0xf]
    %v1112 = vld [vmem:[#allocation2 + $0x170] sm:$0xf]
    %v1113 = vld [vmem:[#allocation2 + $0x174] sm:$0xf]
    %v1114 = vld [vmem:[#allocation2 + $0x178] sm:$0xf]
    %v1115 = vld [vmem:[#allocation2 + $0x17c] sm:$0xf]
    %v1116 = vld [vmem:[#allocation2 + $0x180] sm:$0xf]
    %v1117 = vld [vmem:[#allocation2 + $0x184] sm:$0xf]
    %v1118 = vld [vmem:[#allocation2 + $0x188] sm:$0xf]
    %v1119 = vld [vmem:[#allocation2 + $0x18c] sm:$0xf]
    %v1120 = vld [vmem:[#allocation2 + $0x190] sm:$0xf]
    %v1121 = vld [vmem:[#allocation2 + $0x194] sm:$0xf]
    %v1122 = vld [vmem:[#allocation2 + $0x198] sm:$0xf]
    %v1123 = vld [vmem:[#allocation2 + $0x19c] sm:$0xf]
    %v1124 = vld [vmem:[#allocation2 + $0x1a0] sm:$0xf]
    %v1125 = vld [vmem:[#allocation2 + $0x1a4] sm:$0xf]
    %v1126 = vld [vmem:[#allocation2 + $0x1a8] sm:$0xf]
    %v1127 = vld [vmem:[#allocation2 + $0x1ac] sm:$0xf]
    %v1128 = vld [vmem:[#allocation2 + $0x1b0] sm:$0xf]
    %v1129 = vld [vmem:[#allocation2 + $0x1b4] sm:$0xf]
    %v1130 = vld [vmem:[#allocation2 + $0x1b8] sm:$0xf]
    %v1131 = vld [vmem:[#allocation2 + $0x1bc] sm:$0xf]
    %v1132 = vld [vmem:[#allocation2 + $0x1c0] sm:$0xf]
    %v1133 = vld [vmem:[#allocation2 + $0x1c4] sm:$0xf]
    %v1134 = vld [vmem:[#allocation2 + $0x1c8] sm:$0xf]
    %v1135 = vld [vmem:[#allocation2 + $0x1cc] sm:$0xf]
    %v1136 = vld [vmem:[#allocation2 + $0x1d0] sm:$0xf]
    %v1137 = vld [vmem:[#allocation2 + $0x1d4] sm:$0xf]
    %v1138 = vld [vmem:[#allocation2 + $0x1d8] sm:$0xf]
    %v1139 = vld [vmem:[#allocation2 + $0x1dc] sm:$0xf]
    %v1140 = vld [vmem:[#allocation2 + $0x1e0] sm:$0xf]
    %v1141 = vld [vmem:[#allocation2 + $0x1e4] sm:$0xf]
    %v1142 = vld [vmem:[#allocation2 + $0x1e8] sm:$0xf]
    %v1143 = vld [vmem:[#allocation2 + $0x1ec] sm:$0xf]
    %v1144 = vld [vmem:[#allocation2 + $0x1f0] sm:$0xf]
    %v1145 = vld [vmem:[#allocation2 + $0x1f4] sm:$0xf]
    %v1146 = vld [vmem:[#allocation2 + $0x1f8] sm:$0xf]
    %v1147 = vld [vmem:[#allocation2 + $0x1fc] sm:$0xf]
    %v1148 = vld [vmem:[%s8] sm:$0x1]
    %v1150 = vlaneseq
    %v1151 = vshrl.u32 %v1150, 7
    %v1152 = vsub.s32 0, %v1151
    %v1153 = vrot.slane %v1148, %v1152
    %v1283 = vunpack.c.l.b16 %v1020
    %v1284 = vunpack.c.l.b16 %v1021
    %v1285 = vunpack.c.l.b16 %v1022
    %v1286 = vunpack.c.l.b16 %v1023
    %v1287 = vunpack.c.l.b16 %v1024
    %v1288 = vunpack.c.l.b16 %v1025
    %v1289 = vunpack.c.l.b16 %v1026
    %v1290 = vunpack.c.l.b16 %v1027
    %v1291 = vunpack.c.l.b16 %v1028
    %v1292 = vunpack.c.l.b16 %v1029
    %v1293 = vunpack.c.l.b16 %v1030
    %v1294 = vunpack.c.l.b16 %v1031
    %v1295 = vunpack.c.l.b16 %v1032
    %v1296 = vunpack.c.l.b16 %v1033
    %v1297 = vunpack.c.l.b16 %v1034
    %v1298 = vunpack.c.l.b16 %v1035
    %v1299 = vunpack.c.l.b16 %v1036
    %v1300 = vunpack.c.l.b16 %v1037
    %v1301 = vunpack.c.l.b16 %v1038
    %v1302 = vunpack.c.l.b16 %v1039
    %v1303 = vunpack.c.l.b16 %v1040
    %v1304 = vunpack.c.l.b16 %v1041
    %v1305 = vunpack.c.l.b16 %v1042
    %v1306 = vunpack.c.l.b16 %v1043
    %v1307 = vunpack.c.l.b16 %v1044
    %v1308 = vunpack.c.l.b16 %v1045
    %v1309 = vunpack.c.l.b16 %v1046
    %v1310 = vunpack.c.l.b16 %v1047
    %v1311 = vunpack.c.l.b16 %v1048
    %v1312 = vunpack.c.l.b16 %v1049
    %v1313 = vunpack.c.l.b16 %v1050
    %v1314 = vunpack.c.l.b16 %v1051
    %v1315 = vunpack.c.l.b16 %v1052
    %v1316 = vunpack.c.l.b16 %v1053
    %v1317 = vunpack.c.l.b16 %v1054
    %v1318 = vunpack.c.l.b16 %v1055
    %v1319 = vunpack.c.l.b16 %v1056
    %v1320 = vunpack.c.l.b16 %v1057
    %v1321 = vunpack.c.l.b16 %v1058
    %v1322 = vunpack.c.l.b16 %v1059
    %v1323 = vunpack.c.l.b16 %v1060
    %v1324 = vunpack.c.l.b16 %v1061
    %v1325 = vunpack.c.l.b16 %v1062
    %v1326 = vunpack.c.l.b16 %v1063
    %v1327 = vunpack.c.l.b16 %v1064
    %v1328 = vunpack.c.l.b16 %v1065
    %v1329 = vunpack.c.l.b16 %v1066
    %v1330 = vunpack.c.l.b16 %v1067
    %v1331 = vunpack.c.l.b16 %v1068
    %v1332 = vunpack.c.l.b16 %v1069
    %v1333 = vunpack.c.l.b16 %v1070
    %v1334 = vunpack.c.l.b16 %v1071
    %v1335 = vunpack.c.l.b16 %v1072
    %v1336 = vunpack.c.l.b16 %v1073
    %v1337 = vunpack.c.l.b16 %v1074
    %v1338 = vunpack.c.l.b16 %v1075
    %v1339 = vunpack.c.l.b16 %v1076
    %v1340 = vunpack.c.l.b16 %v1077
    %v1341 = vunpack.c.l.b16 %v1078
    %v1342 = vunpack.c.l.b16 %v1079
    %v1343 = vunpack.c.l.b16 %v1080
    %v1344 = vunpack.c.l.b16 %v1081
    %v1345 = vunpack.c.l.b16 %v1082
    %v1346 = vunpack.c.l.b16 %v1083
    %v1347 = vunpack.c.l.b16 %v1084
    %v1348 = vunpack.c.l.b16 %v1085
    %v1349 = vunpack.c.l.b16 %v1086
    %v1350 = vunpack.c.l.b16 %v1087
    %v1351 = vunpack.c.l.b16 %v1088
    %v1352 = vunpack.c.l.b16 %v1089
    %v1353 = vunpack.c.l.b16 %v1090
    %v1354 = vunpack.c.l.b16 %v1091
    %v1355 = vunpack.c.l.b16 %v1092
    %v1356 = vunpack.c.l.b16 %v1093
    %v1357 = vunpack.c.l.b16 %v1094
    %v1358 = vunpack.c.l.b16 %v1095
    %v1359 = vunpack.c.l.b16 %v1096
    %v1360 = vunpack.c.l.b16 %v1097
    %v1361 = vunpack.c.l.b16 %v1098
    %v1362 = vunpack.c.l.b16 %v1099
    %v1363 = vunpack.c.l.b16 %v1100
    %v1364 = vunpack.c.l.b16 %v1101
    %v1365 = vunpack.c.l.b16 %v1102
    %v1366 = vunpack.c.l.b16 %v1103
    %v1367 = vunpack.c.l.b16 %v1104
    %v1368 = vunpack.c.l.b16 %v1105
    %v1369 = vunpack.c.l.b16 %v1106
    %v1370 = vunpack.c.l.b16 %v1107
    %v1371 = vunpack.c.l.b16 %v1108
    %v1372 = vunpack.c.l.b16 %v1109
    %v1373 = vunpack.c.l.b16 %v1110
    %v1374 = vunpack.c.l.b16 %v1111
    %v1375 = vunpack.c.l.b16 %v1112
    %v1376 = vunpack.c.l.b16 %v1113
    %v1377 = vunpack.c.l.b16 %v1114
    %v1378 = vunpack.c.l.b16 %v1115
    %v1379 = vunpack.c.l.b16 %v1116
    %v1380 = vunpack.c.l.b16 %v1117
    %v1381 = vunpack.c.l.b16 %v1118
    %v1382 = vunpack.c.l.b16 %v1119
    %v1383 = vunpack.c.l.b16 %v1120
    %v1384 = vunpack.c.l.b16 %v1121
    %v1385 = vunpack.c.l.b16 %v1122
    %v1386 = vunpack.c.l.b16 %v1123
    %v1387 = vunpack.c.l.b16 %v1124
    %v1388 = vunpack.c.l.b16 %v1125
    %v1389 = vunpack.c.l.b16 %v1126
    %v1390 = vunpack.c.l.b16 %v1127
    %v1391 = vunpack.c.l.b16 %v1128
    %v1392 = vunpack.c.l.b16 %v1129
    %v1393 = vunpack.c.l.b16 %v1130
    %v1394 = vunpack.c.l.b16 %v1131
    %v1395 = vunpack.c.l.b16 %v1132
    %v1396 = vunpack.c.l.b16 %v1133
    %v1397 = vunpack.c.l.b16 %v1134
    %v1398 = vunpack.c.l.b16 %v1135
    %v1399 = vunpack.c.l.b16 %v1136
    %v1400 = vunpack.c.l.b16 %v1137
    %v1401 = vunpack.c.l.b16 %v1138
    %v1402 = vunpack.c.l.b16 %v1139
    %v1403 = vunpack.c.l.b16 %v1140
    %v1404 = vunpack.c.l.b16 %v1141
    %v1405 = vunpack.c.l.b16 %v1142
    %v1406 = vunpack.c.l.b16 %v1143
    %v1407 = vunpack.c.l.b16 %v1144
    %v1408 = vunpack.c.l.b16 %v1145
    %v1409 = vunpack.c.l.b16 %v1146
    %v1410 = vunpack.c.l.b16 %v1147
    %v1411 = vpack.c.b16 %v1284, %v1283
    %v1412 = vpack.c.b16 %v1286, %v1285
    %v1413 = vpack.c.b16 %v1288, %v1287
    %v1414 = vpack.c.b16 %v1290, %v1289
    %v1415 = vpack.c.b16 %v1292, %v1291
    %v1416 = vpack.c.b16 %v1294, %v1293
    %v1417 = vpack.c.b16 %v1296, %v1295
    %v1418 = vpack.c.b16 %v1298, %v1297
    %v1419 = vpack.c.b16 %v1300, %v1299
    %v1420 = vpack.c.b16 %v1302, %v1301
    %v1421 = vpack.c.b16 %v1304, %v1303
    %v1422 = vpack.c.b16 %v1306, %v1305
    %v1423 = vpack.c.b16 %v1308, %v1307
    %v1424 = vpack.c.b16 %v1310, %v1309
    %v1425 = vpack.c.b16 %v1312, %v1311
    %v1426 = vpack.c.b16 %v1314, %v1313
    %v1427 = vpack.c.b16 %v1316, %v1315
    %v1428 = vpack.c.b16 %v1318, %v1317
    %v1429 = vpack.c.b16 %v1320, %v1319
    %v1430 = vpack.c.b16 %v1322, %v1321
    %v1431 = vpack.c.b16 %v1324, %v1323
    %v1432 = vpack.c.b16 %v1326, %v1325
    %v1433 = vpack.c.b16 %v1328, %v1327
    %v1434 = vpack.c.b16 %v1330, %v1329
    %v1435 = vpack.c.b16 %v1332, %v1331
    %v1436 = vpack.c.b16 %v1334, %v1333
    %v1437 = vpack.c.b16 %v1336, %v1335
    %v1438 = vpack.c.b16 %v1338, %v1337
    %v1439 = vpack.c.b16 %v1340, %v1339
    %v1440 = vpack.c.b16 %v1342, %v1341
    %v1441 = vpack.c.b16 %v1344, %v1343
    %v1442 = vpack.c.b16 %v1346, %v1345
    %v1443 = vpack.c.b16 %v1348, %v1347
    %v1444 = vpack.c.b16 %v1350, %v1349
    %v1445 = vpack.c.b16 %v1352, %v1351
    %v1446 = vpack.c.b16 %v1354, %v1353
    %v1447 = vpack.c.b16 %v1356, %v1355
    %v1448 = vpack.c.b16 %v1358, %v1357
    %v1449 = vpack.c.b16 %v1360, %v1359
    %v1450 = vpack.c.b16 %v1362, %v1361
    %v1451 = vpack.c.b16 %v1364, %v1363
    %v1452 = vpack.c.b16 %v1366, %v1365
    %v1453 = vpack.c.b16 %v1368, %v1367
    %v1454 = vpack.c.b16 %v1370, %v1369
    %v1455 = vpack.c.b16 %v1372, %v1371
    %v1456 = vpack.c.b16 %v1374, %v1373
    %v1457 = vpack.c.b16 %v1376, %v1375
    %v1458 = vpack.c.b16 %v1378, %v1377
    %v1459 = vpack.c.b16 %v1380, %v1379
    %v1460 = vpack.c.b16 %v1382, %v1381
    %v1461 = vpack.c.b16 %v1384, %v1383
    %v1462 = vpack.c.b16 %v1386, %v1385
    %v1463 = vpack.c.b16 %v1388, %v1387
    %v1464 = vpack.c.b16 %v1390, %v1389
    %v1465 = vpack.c.b16 %v1392, %v1391
    %v1466 = vpack.c.b16 %v1394, %v1393
    %v1467 = vpack.c.b16 %v1396, %v1395
    %v1468 = vpack.c.b16 %v1398, %v1397
    %v1469 = vpack.c.b16 %v1400, %v1399
    %v1470 = vpack.c.b16 %v1402, %v1401
    %v1471 = vpack.c.b16 %v1404, %v1403
    %v1472 = vpack.c.b16 %v1406, %v1405
    %v1473 = vpack.c.b16 %v1408, %v1407
    %v1474 = vpack.c.b16 %v1410, %v1409
    %1539 = vmatprep.subr.bf16.mxu0 0
    %1540 = vmatpush1.bf16.msra.mxu0 %v1411
    %1541 = vmatprep.subr.bf16.mxu0 0
    %1542 = vmatpush1.bf16.msra.mxu0 %v1412
    %1543 = vmatprep.subr.bf16.mxu0 0
    %1544 = vmatpush1.bf16.msra.mxu0 %v1413
    %1545 = vmatprep.subr.bf16.mxu0 0
    %1546 = vmatpush1.bf16.msra.mxu0 %v1414
    %1547 = vmatprep.subr.bf16.mxu0 0
    %1548 = vmatpush1.bf16.msra.mxu0 %v1415
    %1549 = vmatprep.subr.bf16.mxu0 0
    %1550 = vmatpush1.bf16.msra.mxu0 %v1416
    %1551 = vmatprep.subr.bf16.mxu0 0
    %1552 = vmatpush1.bf16.msra.mxu0 %v1417
    %1553 = vmatprep.subr.bf16.mxu0 0
    %1554 = vmatpush1.bf16.msra.mxu0 %v1418
    %1555 = vmatprep.subr.bf16.mxu0 0
    %1556 = vmatpush1.bf16.msra.mxu0 %v1419
    %1557 = vmatprep.subr.bf16.mxu0 0
    %1558 = vmatpush1.bf16.msra.mxu0 %v1420
    %1559 = vmatprep.subr.bf16.mxu0 0
    %1560 = vmatpush1.bf16.msra.mxu0 %v1421
    %1561 = vmatprep.subr.bf16.mxu0 0
    %1562 = vmatpush1.bf16.msra.mxu0 %v1422
    %1563 = vmatprep.subr.bf16.mxu0 0
    %1564 = vmatpush1.bf16.msra.mxu0 %v1423
    %1565 = vmatprep.subr.bf16.mxu0 0
    %1566 = vmatpush1.bf16.msra.mxu0 %v1424
    %1567 = vmatprep.subr.bf16.mxu0 0
    %1568 = vmatpush1.bf16.msra.mxu0 %v1425
    %1569 = vmatprep.subr.bf16.mxu0 0
    %1570 = vmatpush1.bf16.msra.mxu0 %v1426
    %1571 = vmatprep.mubr.bf16.mxu0 %v1013
    %1572 = vmatmul.mubr.bf16.gmra.mrb[0].mxu0 %v1012
    %v1573 = vpop.f32.mrb[0].mxu0
    %v1574 = vadd.f32 %v1153, %v1573
    %v1575 = vpop.f32.mrb[0].mxu0
    %v1576 = vpop.f32.mrb[0].mxu0
    %v1577 = vadd.f32 %v1153, %v1576
    %v1578 = vpop.f32.mrb[0].mxu0
    %1579 = vdwg.mxu0
    %1580 = vmatprep.subr.bf16.mxu0 0
    %1581 = vmatpush1.bf16.msra.mxu0 %v1427
    %1582 = vmatprep.subr.bf16.mxu0 0
    %1583 = vmatpush1.bf16.msra.mxu0 %v1428
    %1584 = vmatprep.subr.bf16.mxu0 0
    %1585 = vmatpush1.bf16.msra.mxu0 %v1429
    %1586 = vmatprep.subr.bf16.mxu0 0
    %1587 = vmatpush1.bf16.msra.mxu0 %v1430
    %1588 = vmatprep.subr.bf16.mxu0 0
    %1589 = vmatpush1.bf16.msra.mxu0 %v1431
    %1590 = vmatprep.subr.bf16.mxu0 0
    %1591 = vmatpush1.bf16.msra.mxu0 %v1432
    %1592 = vmatprep.subr.bf16.mxu0 0
    %1593 = vmatpush1.bf16.msra.mxu0 %v1433
    %1594 = vmatprep.subr.bf16.mxu0 0
    %1595 = vmatpush1.bf16.msra.mxu0 %v1434
    %1596 = vmatprep.subr.bf16.mxu0 0
    %1597 = vmatpush1.bf16.msra.mxu0 %v1435
    %1598 = vmatprep.subr.bf16.mxu0 0
    %1599 = vmatpush1.bf16.msra.mxu0 %v1436
    %1600 = vmatprep.subr.bf16.mxu0 0
    %1601 = vmatpush1.bf16.msra.mxu0 %v1437
    %1602 = vmatprep.subr.bf16.mxu0 0
    %1603 = vmatpush1.bf16.msra.mxu0 %v1438
    %1604 = vmatprep.subr.bf16.mxu0 0
    %1605 = vmatpush1.bf16.msra.mxu0 %v1439
    %1606 = vmatprep.subr.bf16.mxu0 0
    %1607 = vmatpush1.bf16.msra.mxu0 %v1440
    %1608 = vmatprep.subr.bf16.mxu0 0
    %1609 = vmatpush1.bf16.msra.mxu0 %v1441
    %1610 = vmatprep.subr.bf16.mxu0 0
    %1611 = vmatpush1.bf16.msra.mxu0 %v1442
    %1612 = vmatprep.mubr.bf16.mxu0 %v1015
    %1613 = vmatmul.mubr.bf16.gmra.mrb[0].mxu0 %v1014
    %v1614 = vpop.f32.mrb[0].mxu0
    %v1615 = vadd.f32 %v1574, %v1614
    %v1616 = vpop.f32.mrb[0].mxu0
    %v1617 = vpop.f32.mrb[0].mxu0
    %v1618 = vadd.f32 %v1577, %v1617
    %v1619 = vpop.f32.mrb[0].mxu0
    %1620 = vdwg.mxu0
    %1621 = vmatprep.subr.bf16.mxu0 0
    %1622 = vmatpush1.bf16.msra.mxu0 %v1443
    %1623 = vmatprep.subr.bf16.mxu0 0
    %1624 = vmatpush1.bf16.msra.mxu0 %v1444
    %1625 = vmatprep.subr.bf16.mxu0 0
    %1626 = vmatpush1.bf16.msra.mxu0 %v1445
    %1627 = vmatprep.subr.bf16.mxu0 0
    %1628 = vmatpush1.bf16.msra.mxu0 %v1446
    %1629 = vmatprep.subr.bf16.mxu0 0
    %1630 = vmatpush1.bf16.msra.mxu0 %v1447
    %1631 = vmatprep.subr.bf16.mxu0 0
    %1632 = vmatpush1.bf16.msra.mxu0 %v1448
    %1633 = vmatprep.subr.bf16.mxu0 0
    %1634 = vmatpush1.bf16.msra.mxu0 %v1449
    %1635 = vmatprep.subr.bf16.mxu0 0
    %1636 = vmatpush1.bf16.msra.mxu0 %v1450
    %1637 = vmatprep.subr.bf16.mxu0 0
    %1638 = vmatpush1.bf16.msra.mxu0 %v1451
    %1639 = vmatprep.subr.bf16.mxu0 0
    %1640 = vmatpush1.bf16.msra.mxu0 %v1452
    %1641 = vmatprep.subr.bf16.mxu0 0
    %1642 = vmatpush1.bf16.msra.mxu0 %v1453
    %1643 = vmatprep.subr.bf16.mxu0 0
    %1644 = vmatpush1.bf16.msra.mxu0 %v1454
    %1645 = vmatprep.subr.bf16.mxu0 0
    %1646 = vmatpush1.bf16.msra.mxu0 %v1455
    %1647 = vmatprep.subr.bf16.mxu0 0
    %1648 = vmatpush1.bf16.msra.mxu0 %v1456
    %1649 = vmatprep.subr.bf16.mxu0 0
    %1650 = vmatpush1.bf16.msra.mxu0 %v1457
    %1651 = vmatprep.subr.bf16.mxu0 0
    %1652 = vmatpush1.bf16.msra.mxu0 %v1458
    %1653 = vmatprep.mubr.bf16.mxu0 %v1017
    %1654 = vmatmul.mubr.bf16.gmra.mrb[0].mxu0 %v1016
    %v1655 = vpop.f32.mrb[0].mxu0
    %v1656 = vadd.f32 %v1615, %v1655
    %v1657 = vpop.f32.mrb[0].mxu0
    %v1658 = vpop.f32.mrb[0].mxu0
    %v1659 = vadd.f32 %v1618, %v1658
    %v1660 = vpop.f32.mrb[0].mxu0
    %1661 = vdwg.mxu0
    %1662 = vmatprep.subr.bf16.mxu0 0
    %1663 = vmatpush1.bf16.msra.mxu0 %v1459
    %1664 = vmatprep.subr.bf16.mxu0 0
    %1665 = vmatpush1.bf16.msra.mxu0 %v1460
    %1666 = vmatprep.subr.bf16.mxu0 0
    %1667 = vmatpush1.bf16.msra.mxu0 %v1461
    %1668 = vmatprep.subr.bf16.mxu0 0
    %1669 = vmatpush1.bf16.msra.mxu0 %v1462
    %1670 = vmatprep.subr.bf16.mxu0 0
    %1671 = vmatpush1.bf16.msra.mxu0 %v1463
    %1672 = vmatprep.subr.bf16.mxu0 0
    %1673 = vmatpush1.bf16.msra.mxu0 %v1464
    %1674 = vmatprep.subr.bf16.mxu0 0
    %1675 = vmatpush1.bf16.msra.mxu0 %v1465
    %1676 = vmatprep.subr.bf16.mxu0 0
    %1677 = vmatpush1.bf16.msra.mxu0 %v1466
    %1678 = vmatprep.subr.bf16.mxu0 0
    %1679 = vmatpush1.bf16.msra.mxu0 %v1467
    %1680 = vmatprep.subr.bf16.mxu0 0
    %1681 = vmatpush1.bf16.msra.mxu0 %v1468
    %1682 = vmatprep.subr.bf16.mxu0 0
    %1683 = vmatpush1.bf16.msra.mxu0 %v1469
    %1684 = vmatprep.subr.bf16.mxu0 0
    %1685 = vmatpush1.bf16.msra.mxu0 %v1470
    %1686 = vmatprep.subr.bf16.mxu0 0
    %1687 = vmatpush1.bf16.msra.mxu0 %v1471
    %1688 = vmatprep.subr.bf16.mxu0 0
    %1689 = vmatpush1.bf16.msra.mxu0 %v1472
    %1690 = vmatprep.subr.bf16.mxu0 0
    %1691 = vmatpush1.bf16.msra.mxu0 %v1473
    %1692 = vmatprep.subr.bf16.mxu0 0
    %1693 = vmatpush1.bf16.msra.mxu0 %v1474
    %1694 = vmatprep.mubr.bf16.mxu0 %v1019
    %1695 = vmatmul.mubr.bf16.gmra.mrb[0].mxu0 %v1018
    %v1696 = vpop.f32.mrb[0].mxu0
    %v1697 = vadd.f32 %v1656, %v1696
    %v1698 = vpop.f32.mrb[0].mxu0
    %v1699 = vpop.f32.mrb[0].mxu0
    %v1700 = vadd.f32 %v1659, %v1699
    %v1701 = vpop.f32.mrb[0].mxu0
    %1702 = vdwg.mxu0
    %v1703 = vtanh.pop %v1697
    %v1704 = vtanh.pop %v1700
    %1705 = vst [vmem:[#allocation5] sm:$0xff] %v1703
    %1706 = vst [vmem:[#allocation5 + $0x8] sm:$0xff] %v1704
    // Predicated region
    $region42: #{tpu_custom_call.1} parent=1 // pred_check
      _
    $region43: #{tpu_custom_call.1} parent=1 // pred_check_branch
      %1708 = sbr.rel (0) target = $region45
    $region44: #{tpu_custom_call.1} parent=1 // pred_region
      %s1710 = ssub.s32 256, 256
      %1711 = vsyncadd [#allocation4], %s1710
      %s1712 = sshll.u32 [#allocation5], 4
      %s1713 = int_to_ptr.vmem [resolvable:$true] %s1712
      %1718 = dma.vmem_to_hbm [thread:$0]  %s1713, 256, %s9, [#allocation4], 128, 128, 8
    $region45: #{tpu_custom_call.1} parent=1 // pred_fallthru
      _
    // Predicated region
    $region46: #{tpu_custom_call.1} parent=1 // pred_check
      _
    $region47: #{tpu_custom_call.1} parent=1 // pred_check_branch
      %1720 = sbr.rel (0) target = $region49
    $region48: #{tpu_custom_call.1} parent=1 // pred_region
      %1721 = dma.done [#allocation4], 256
    $region49: #{tpu_custom_call.1} parent=1 // pred_fallthru
      _
    %1722 = vsyncpa [#allocation3], 1
    %1723 = vsyncpa [#allocation4], 1

</llo_original>
